<compile_context>
chip_gen: v7x
topology: tpu7x:2x2x1
jax: 0.10.0
libtpu: 0.0.40
codegen_flags: <defaults>
</compile_context>

<pallas_src>
import functools

import jax
import jax.numpy as jnp
from jax.experimental import pallas as pl
from jax.experimental.pallas import tpu as pltpu

IN_DIM = 28 * 28          # 784 (nn.Flatten of (N, 28, 28))
HID = 512
OUT_DIM = 10
OUT_PAD = 128             # lane-dense output (slice [:, :10] in the wrapper)
TM_MAX = 512              # max batch tile (sweep 512-1024 if VMEM allows)


def mlp_kernel(x_ref, w1_ref, b1_ref, w2_ref, b2_ref, w3_ref, b3_ref, o_ref):
    # x tile: (TM, 784) f32 -> cast to bf16 in-kernel (saves the wrapper pass).
    x = x_ref[...].astype(jnp.bfloat16)
    h1 = jnp.dot(x, w1_ref[...], preferred_element_type=jnp.float32) + b1_ref[...]
    h1 = jnp.maximum(h1, 0.0).astype(jnp.bfloat16)           # ReLU in f32, recast for MXU
    h2 = jnp.dot(h1, w2_ref[...], preferred_element_type=jnp.float32) + b2_ref[...]
    h2 = jnp.maximum(h2, 0.0).astype(jnp.bfloat16)
    o_ref[...] = jnp.dot(h2, w3_ref[...], preferred_element_type=jnp.float32) + b3_ref[...]


def _choose_tm(n):
    """Batch tile: multiple of 8, capped at TM_MAX, >=2 grid steps when possible."""
    n8 = max(8, ((n + 7) // 8) * 8)
    if n8 <= 16:
        return n8                                   # tiny batch: single tile
    half = ((n8 // 2 + 7) // 8) * 8                 # >=2 steps -> v7x 2-TC sharding
    return min(TM_MAX, half)


def prepare_params(params):
    """One-time prep: bf16 weights, padded W3/b3, f32 biases as (1, fan_out)."""
    w1, b1, w2, b2, w3, b3 = params
    w1p = jnp.asarray(w1, jnp.bfloat16)                                   # (784, 512)
    w2p = jnp.asarray(w2, jnp.bfloat16)                                   # (512, 512)
    w3p = jnp.pad(jnp.asarray(w3, jnp.float32),
                  ((0, 0), (0, OUT_PAD - OUT_DIM))).astype(jnp.bfloat16)  # (512, 128)
    b1p = jnp.asarray(b1, jnp.float32).reshape(1, HID)
    b2p = jnp.asarray(b2, jnp.float32).reshape(1, HID)
    b3p = jnp.pad(jnp.asarray(b3, jnp.float32).reshape(1, OUT_DIM),
                  ((0, 0), (0, OUT_PAD - OUT_DIM)))                       # (1, 128)
    return w1p, b1p, w2p, b2p, w3p, b3p


@jax.jit
def neural_network_forward(x, prepared_params):
    """x: (N, 28, 28) float32, prepared_params from prepare_params() -> (N, 10) f32."""
    w1p, b1p, w2p, b2p, w3p, b3p = prepared_params
    n = x.shape[0]

    # Flatten only; no feature-dim pad, no dtype conversion pass over x.
    x2d = x.reshape(n, IN_DIM).astype(jnp.float32)

    tm = _choose_tm(n)
    n_pad = pl.cdiv(n, tm) * tm
    if n_pad != n:
        x2d = jnp.pad(x2d, ((0, n_pad - n), (0, 0)))

    grid = (n_pad // tm,)
    resident = lambda i: (0, 0)   # weights/biases: same block every grid step

    flops = 2 * n_pad * (IN_DIM * HID + HID * HID + HID * OUT_PAD)
    bytes_accessed = (
        x2d.size * 4
        + w1p.size * 2 + w2p.size * 2 + w3p.size * 2
        + b1p.size * 4 + b2p.size * 4 + b3p.size * 4
        + n_pad * OUT_PAD * 4
    )

    out = pl.pallas_call(
        mlp_kernel,
        out_shape=jax.ShapeDtypeStruct((n_pad, OUT_PAD), jnp.float32),
        grid=grid,
        in_specs=[
            pl.BlockSpec((tm, IN_DIM), lambda i: (i, 0)),     # x: streamed, f32
            pl.BlockSpec((IN_DIM, HID), resident),            # W1
            pl.BlockSpec((1, HID), resident),                 # b1
            pl.BlockSpec((HID, HID), resident),               # W2
            pl.BlockSpec((1, HID), resident),                 # b2
            pl.BlockSpec((HID, OUT_PAD), resident),           # W3
            pl.BlockSpec((1, OUT_PAD), resident),             # b3
        ],
        out_specs=pl.BlockSpec((tm, OUT_PAD), lambda i: (i, 0)),
        compiler_params=pltpu.CompilerParams(
            dimension_semantics=("parallel",),
        ),
        cost_estimate=pl.CostEstimate(
            flops=flops, transcendentals=0, bytes_accessed=bytes_accessed
        ),
    )(x2d, w1p, b1p, w2p, b2p, w3p, b3p)

    return out[:n, :OUT_DIM]


def init_params(key):
    """Deterministic init mimicking nn.Linear's U(-1/sqrt(fan_in), 1/sqrt(fan_in)).

    Weights stored as (in_features, out_features): y = x @ W + b, identical to
    PyTorch's x @ W_pt.T + b.
    """
    ks = jax.random.split(key, 6)

    def linear(kw, kb, fan_in, fan_out):
        bound = 1.0 / jnp.sqrt(jnp.float32(fan_in))
        w = jax.random.uniform(kw, (fan_in, fan_out), jnp.float32, -bound, bound)
        b = jax.random.uniform(kb, (1, fan_out), jnp.float32, -bound, bound)
        return w, b

    w1, b1 = linear(ks[0], ks[1], IN_DIM, HID)
    w2, b2 = linear(ks[2], ks[3], HID, HID)
    w3, b3 = linear(ks[4], ks[5], HID, OUT_DIM)
    return w1, b1, w2, b2, w3, b3


if __name__ == "__main__":
    key = jax.random.PRNGKey(0)
    k_params, k_x = jax.random.split(key)
    params = init_params(k_params)
    prepared = prepare_params(params)          # one-time weight prep (bf16 + pad)
    prepared = jax.block_until_ready(prepared)

    # Matches the driver script: X = torch.rand(3, 28, 28)
    x = jax.random.uniform(k_x, (3, 28, 28), jnp.float32)

    logits = neural_network_forward(x, prepared)
    logits = jax.block_until_ready(logits)

    # Pure-JAX reference with the same bf16-operand / f32-accumulate math.
    w1, b1, w2, b2, w3, b3 = params
    xf = x.reshape(3, IN_DIM)
    h = jnp.dot(xf.astype(jnp.bfloat16), w1.astype(jnp.bfloat16),
                preferred_element_type=jnp.float32) + b1
    h = jnp.maximum(h, 0.0).astype(jnp.bfloat16)
    h = jnp.dot(h, w2.astype(jnp.bfloat16),
                preferred_element_type=jnp.float32) + b2
    h = jnp.maximum(h, 0.0).astype(jnp.bfloat16)
    ref = jnp.dot(h, w3.astype(jnp.bfloat16),
                  preferred_element_type=jnp.float32) + b3

    assert logits.shape == (3, OUT_DIM)
    assert jnp.allclose(logits, ref, atol=2e-2, rtol=2e-2), (
        jnp.max(jnp.abs(logits - ref)))

    print("KERNEL_OK")
</pallas_src>

<mosaic_0001>
module attributes {stable_mosaic.version = 11 : i64} {
  func.func @mlp_kernel(%arg0: i32, %arg1: memref<8x784xf32, #tpu.memory_space<vmem>>, %arg2: memref<784x512xbf16, #tpu.memory_space<vmem>>, %arg3: memref<1x512xf32, #tpu.memory_space<vmem>>, %arg4: memref<512x512xbf16, #tpu.memory_space<vmem>>, %arg5: memref<1x512xf32, #tpu.memory_space<vmem>>, %arg6: memref<512x128xbf16, #tpu.memory_space<vmem>>, %arg7: memref<1x128xf32, #tpu.memory_space<vmem>>, %arg8: memref<8x128xf32, #tpu.memory_space<vmem>>) attributes {dimension_semantics = [#tpu.dimension_semantics<parallel>], iteration_bounds = array<i64: 1>, scalar_prefetch = 0 : i64, scratch_operands = 0 : i64, tpu.core_type = #tpu.core_type<tc>, window_params = [{transform_indices = @transform_0, window_bounds = array<i64: 8, 784>}, {pipeline_mode = #tpu.pipeline_mode<synchronous>, transform_indices = @transform_1, window_bounds = array<i64: 784, 512>}, {pipeline_mode = #tpu.pipeline_mode<synchronous>, transform_indices = @transform_2, window_bounds = array<i64: 1, 512>}, {pipeline_mode = #tpu.pipeline_mode<synchronous>, transform_indices = @transform_3, window_bounds = array<i64: 512, 512>}, {pipeline_mode = #tpu.pipeline_mode<synchronous>, transform_indices = @transform_4, window_bounds = array<i64: 1, 512>}, {pipeline_mode = #tpu.pipeline_mode<synchronous>, transform_indices = @transform_5, window_bounds = array<i64: 512, 128>}, {pipeline_mode = #tpu.pipeline_mode<synchronous>, transform_indices = @transform_6, window_bounds = array<i64: 1, 128>}, {transform_indices = @transform_7, window_bounds = array<i64: 8, 128>}]} {
    %c0 = arith.constant 0 : index
    %c0_0 = arith.constant 0 : index
    %0 = vector.load %arg1[%c0, %c0_0] : memref<8x784xf32, #tpu.memory_space<vmem>>, vector<8x784xf32>
    %1 = arith.truncf %0 : vector<8x784xf32> to vector<8x784xbf16>
    %c0_1 = arith.constant 0 : index
    %c0_2 = arith.constant 0 : index
    %2 = vector.load %arg2[%c0_1, %c0_2] : memref<784x512xbf16, #tpu.memory_space<vmem>>, vector<784x512xbf16>
    %cst = arith.constant dense<0.000000e+00> : vector<8x512xf32>
    %3 = tpu.matmul %1, %2, %cst {dimension_numbers = #tpu.dot_dimension_numbers<[1], [0], [0], [1], [0, 0, 1, 1], [], []>} : vector<8x784xbf16>, vector<784x512xbf16>, vector<8x512xf32> -> vector<8x512xf32>
    %c0_3 = arith.constant 0 : index
    %c0_4 = arith.constant 0 : index
    %4 = vector.load %arg3[%c0_3, %c0_4] : memref<1x512xf32, #tpu.memory_space<vmem>>, vector<1x512xf32>
    %5 = vector.broadcast %4 : vector<1x512xf32> to vector<8x512xf32>
    %6 = arith.addf %3, %5 : vector<8x512xf32>
    %cst_5 = arith.constant 0.000000e+00 : f32
    %7 = vector.broadcast %cst_5 : f32 to vector<8x512xf32>
    %8 = arith.maximumf %6, %7 : vector<8x512xf32>
    %9 = arith.truncf %8 : vector<8x512xf32> to vector<8x512xbf16>
    %c0_6 = arith.constant 0 : index
    %c0_7 = arith.constant 0 : index
    %10 = vector.load %arg4[%c0_6, %c0_7] : memref<512x512xbf16, #tpu.memory_space<vmem>>, vector<512x512xbf16>
    %cst_8 = arith.constant dense<0.000000e+00> : vector<8x512xf32>
    %11 = tpu.matmul %9, %10, %cst_8 {dimension_numbers = #tpu.dot_dimension_numbers<[1], [0], [0], [1], [0, 0, 1, 1], [], []>} : vector<8x512xbf16>, vector<512x512xbf16>, vector<8x512xf32> -> vector<8x512xf32>
    %c0_9 = arith.constant 0 : index
    %c0_10 = arith.constant 0 : index
    %12 = vector.load %arg5[%c0_9, %c0_10] : memref<1x512xf32, #tpu.memory_space<vmem>>, vector<1x512xf32>
    %13 = vector.broadcast %12 : vector<1x512xf32> to vector<8x512xf32>
    %14 = arith.addf %11, %13 : vector<8x512xf32>
    %cst_11 = arith.constant 0.000000e+00 : f32
    %15 = vector.broadcast %cst_11 : f32 to vector<8x512xf32>
    %16 = arith.maximumf %14, %15 : vector<8x512xf32>
    %17 = arith.truncf %16 : vector<8x512xf32> to vector<8x512xbf16>
    %c0_12 = arith.constant 0 : index
    %c0_13 = arith.constant 0 : index
    %18 = vector.load %arg6[%c0_12, %c0_13] : memref<512x128xbf16, #tpu.memory_space<vmem>>, vector<512x128xbf16>
    %cst_14 = arith.constant dense<0.000000e+00> : vector<8x128xf32>
    %19 = tpu.matmul %17, %18, %cst_14 {dimension_numbers = #tpu.dot_dimension_numbers<[1], [0], [0], [1], [0, 0, 1, 1], [], []>} : vector<8x512xbf16>, vector<512x128xbf16>, vector<8x128xf32> -> vector<8x128xf32>
    %c0_15 = arith.constant 0 : index
    %c0_16 = arith.constant 0 : index
    %20 = vector.load %arg7[%c0_15, %c0_16] : memref<1x128xf32, #tpu.memory_space<vmem>>, vector<1x128xf32>
    %21 = vector.broadcast %20 : vector<1x128xf32> to vector<8x128xf32>
    %22 = arith.addf %19, %21 : vector<8x128xf32>
    %c0_17 = arith.constant 0 : index
    %c0_18 = arith.constant 0 : index
    %23 = vector.load %arg8[%c0_17, %c0_18] : memref<8x128xf32, #tpu.memory_space<vmem>>, vector<8x128xf32>
    tpu.vector_store %arg8[%c0_17, %c0_18], %22 {strides = array<i32>} : memref<8x128xf32, #tpu.memory_space<vmem>>, vector<8x128xf32>,
    return
  }
  func.func @transform_0(%arg0: i32) -> (i32, i32) {
    %c0_i32 = arith.constant 0 : i32
    %c0_i32_0 = arith.constant 0 : i32
    return %arg0, %c0_i32 : i32, i32
  }
  func.func @transform_1(%arg0: i32) -> (i32, i32) {
    %c0_i32 = arith.constant 0 : i32
    %c0_i32_0 = arith.constant 0 : i32
    %c0_i32_1 = arith.constant 0 : i32
    return %c0_i32, %c0_i32_0 : i32, i32
  }
  func.func @transform_2(%arg0: i32) -> (i32, i32) {
    %c0_i32 = arith.constant 0 : i32
    %c0_i32_0 = arith.constant 0 : i32
    %c0_i32_1 = arith.constant 0 : i32
    return %c0_i32, %c0_i32_0 : i32, i32
  }
  func.func @transform_3(%arg0: i32) -> (i32, i32) {
    %c0_i32 = arith.constant 0 : i32
    %c0_i32_0 = arith.constant 0 : i32
    %c0_i32_1 = arith.constant 0 : i32
    return %c0_i32, %c0_i32_0 : i32, i32
  }
  func.func @transform_4(%arg0: i32) -> (i32, i32) {
    %c0_i32 = arith.constant 0 : i32
    %c0_i32_0 = arith.constant 0 : i32
    %c0_i32_1 = arith.constant 0 : i32
    return %c0_i32, %c0_i32_0 : i32, i32
  }
  func.func @transform_5(%arg0: i32) -> (i32, i32) {
    %c0_i32 = arith.constant 0 : i32
    %c0_i32_0 = arith.constant 0 : i32
    %c0_i32_1 = arith.constant 0 : i32
    return %c0_i32, %c0_i32_0 : i32, i32
  }
  func.func @transform_6(%arg0: i32) -> (i32, i32) {
    %c0_i32 = arith.constant 0 : i32
    %c0_i32_0 = arith.constant 0 : i32
    %c0_i32_1 = arith.constant 0 : i32
    return %c0_i32, %c0_i32_0 : i32, i32
  }
  func.func @transform_7(%arg0: i32) -> (i32, i32) {
    %c0_i32 = arith.constant 0 : i32
    %c0_i32_0 = arith.constant 0 : i32
    return %arg0, %c0_i32 : i32, i32
  }
}

</mosaic_0001>

<llo_original>
// kernel: neural_network_forward.1
$region0: #{neural_network_forward.1}
  #allocation0 [shape = 'u32[]', space=smem, size = 0x4, offset = 0x4, fixed_abs, tag = 'smem constant byte address 0x4 - core index']
  #allocation1 [shape = 'u32[144,128]{1,0:T(1,128)}', space=vmem, size = 0x12000, scoped, tag = 'internal scratch']
  %s0 = inlined_call_operand.vmem [shape: f32[8,784], index: 0, kind: input, shape index: {}]
  %s1 = inlined_call_operand.hbm [shape: bf16[784,512], index: 1, kind: input, shape index: {}]
  %s2 = inlined_call_operand.vmem [shape: f32[1,512], index: 2, kind: input, shape index: {}]
  %s3 = inlined_call_operand.hbm [shape: bf16[512,512], index: 3, kind: input, shape index: {}]
  %s4 = inlined_call_operand.vmem [shape: f32[1,512], index: 4, kind: input, shape index: {}]
  %s5 = inlined_call_operand.hbm [shape: bf16[512,128], index: 5, kind: input, shape index: {}]
  %s6 = inlined_call_operand.vmem [shape: f32[1,128], index: 6, kind: input, shape index: {}]
  %s7 = inlined_call_operand.vmem [shape: f32[8,128], index: 7, kind: output, shape index: {}]
  %s8 = sld [smem:[#allocation0]]
  $region50: #{neural_network_forward.1} parent=0
    _
  %s10 = ssub.s32 1, %s8
  %s11 = scalar_select 0, %s10, %s8
  $region1: #{neural_network_forward.1} parent=0
    #allocation2 [shape = 'u8[802816]{0}', space=vmem, size = 0xc4000, scoped, tag = 'input window, operand 1, single buffered']
    #allocation3 [shape = 's32[1]{0}', space=sflag, size = 0x4, scoped, tag = 'scoped memory for neural_network_forward.1']
    #allocation4 [shape = 'u8[524288]{0}', space=vmem, size = 0x80000, scoped, tag = 'input window, operand 3, single buffered']
    #allocation5 [shape = 's32[1]{0}', space=sflag, size = 0x4, scoped, tag = 'scoped memory for neural_network_forward.1']
    #allocation6 [shape = 'u8[131072]{0}', space=vmem, size = 0x20000, scoped, tag = 'input window, operand 5, single buffered']
    %12 = vsyncpa [#allocation3], 0
    %13 = vsyncpa [#allocation5], 0
    // Predicated region
    $region2: #{neural_network_forward.1} parent=1 // pred_check
      _
    $region3: #{neural_network_forward.1} parent=1 // pred_check_branch
      %15 = sbr.rel (0) target = $region5
    $region4: #{neural_network_forward.1} parent=1 // pred_region
      _
    $region5: #{neural_network_forward.1} parent=1 // pred_fallthru
      _
    // Predicated region
    $region6: #{neural_network_forward.1} parent=1 // pred_check
      _
    $region7: #{neural_network_forward.1} parent=1 // pred_check_branch
      %17 = sbr.rel (0) target = $region9
    $region8: #{neural_network_forward.1} parent=1 // pred_region
      %s19 = ssub.s32 25088, 25088
      %20 = vsyncadd [#allocation3], %s19
      %s21 = sshll.u32 [#allocation2], 4
      %s22 = int_to_ptr.vmem [resolvable:$true] %s21
      %27 = dma.hbm_to_vmem [thread:$0]  %s1, 25088, %s22, [#allocation3], 256, 256, 16
    $region9: #{neural_network_forward.1} parent=1 // pred_fallthru
      _
    // Predicated region
    $region10: #{neural_network_forward.1} parent=1 // pred_check
      _
    $region11: #{neural_network_forward.1} parent=1 // pred_check_branch
      %29 = sbr.rel (0) target = $region13
    $region12: #{neural_network_forward.1} parent=1 // pred_region
      _
    $region13: #{neural_network_forward.1} parent=1 // pred_fallthru
      _
    // Predicated region
    $region14: #{neural_network_forward.1} parent=1 // pred_check
      _
    $region15: #{neural_network_forward.1} parent=1 // pred_check_branch
      %31 = sbr.rel (0) target = $region17
    $region16: #{neural_network_forward.1} parent=1 // pred_region
      %s33 = ssub.s32 16384, 16384
      %34 = vsyncadd [#allocation5], %s33
      %s35 = sshll.u32 [#allocation4], 4
      %s36 = int_to_ptr.vmem [resolvable:$true] %s35
      %41 = dma.hbm_to_vmem [thread:$0]  %s3, 16384, %s36, [#allocation5], 256, 256, 16
    $region17: #{neural_network_forward.1} parent=1 // pred_fallthru
      _
    // Predicated region
    $region18: #{neural_network_forward.1} parent=1 // pred_check
      _
    $region19: #{neural_network_forward.1} parent=1 // pred_check_branch
      %43 = sbr.rel (0) target = $region21
    $region20: #{neural_network_forward.1} parent=1 // pred_region
      _
    $region21: #{neural_network_forward.1} parent=1 // pred_fallthru
      _
    // Predicated region
    $region22: #{neural_network_forward.1} parent=1 // pred_check
      _
    $region23: #{neural_network_forward.1} parent=1 // pred_check_branch
      %45 = sbr.rel (0) target = $region25
    $region24: #{neural_network_forward.1} parent=1 // pred_region
      %s47 = ssub.s32 4096, 4096
      %48 = vsyncadd [#allocation5], %s47
      %s49 = sshll.u32 [#allocation6], 4
      %s50 = int_to_ptr.vmem [resolvable:$true] %s49
      %55 = dma.hbm_to_vmem [thread:$0]  %s5, 4096, %s50, [#allocation5], 64, 64, 4
    $region25: #{neural_network_forward.1} parent=1 // pred_fallthru
      _
    // Predicated region
    $region26: #{neural_network_forward.1} parent=1 // pred_check
      _
    $region27: #{neural_network_forward.1} parent=1 // pred_check_branch
      %57 = sbr.rel (0) target = $region29
    $region28: #{neural_network_forward.1} parent=1 // pred_region
      _
    $region29: #{neural_network_forward.1} parent=1 // pred_fallthru
      _
    // Predicated region
    $region30: #{neural_network_forward.1} parent=1 // pred_check
      _
    $region31: #{neural_network_forward.1} parent=1 // pred_check_branch
      %59 = sbr.rel (0) target = $region33
    $region32: #{neural_network_forward.1} parent=1 // pred_region
      %60 = dma.done [#allocation3], 25088
    $region33: #{neural_network_forward.1} parent=1 // pred_fallthru
      _
    // Predicated region
    $region34: #{neural_network_forward.1} parent=1 // pred_check
      _
    $region35: #{neural_network_forward.1} parent=1 // pred_check_branch
      %62 = sbr.rel (0) target = $region37
    $region36: #{neural_network_forward.1} parent=1 // pred_region
      %63 = dma.done [#allocation5], 16384
    $region37: #{neural_network_forward.1} parent=1 // pred_fallthru
      _
    // Predicated region
    $region38: #{neural_network_forward.1} parent=1 // pred_check
      _
    $region39: #{neural_network_forward.1} parent=1 // pred_check_branch
      %65 = sbr.rel (0) target = $region41
    $region40: #{neural_network_forward.1} parent=1 // pred_region
      %66 = dma.done [#allocation5], 4096
    $region41: #{neural_network_forward.1} parent=1 // pred_fallthru
      _
    %v68 = vld [vmem:[%s0] sm:$0xff]
    %v69 = vld [vmem:[%s0 + $0x8] sm:$0xff]
    %v70 = vld [vmem:[%s0 + $0x10] sm:$0xff]
    %v71 = vld [vmem:[%s0 + $0x18] sm:$0xff]
    %v72 = vld [vmem:[%s0 + $0x20] sm:$0xff]
    %v73 = vld [vmem:[%s0 + $0x28] sm:$0xff]
    %v74 = vld [vmem:[%s0 + $0x30] sm:$0xff]
    %v75 = vpack.c.bf16 %v68, %v68
    %v76 = vpack.c.bf16 %v69, %v69
    %v77 = vpack.c.bf16 %v70, %v70
    %v78 = vpack.c.bf16 %v71, %v71
    %v79 = vpack.c.bf16 %v72, %v72
    %v80 = vpack.c.bf16 %v73, %v73
    %v81 = vpack.c.bf16 %v74, %v74
    %v82 = vld [vmem:[#allocation2] sm:$0xff]
    %v83 = vld [vmem:[#allocation2 + $0x8] sm:$0xff]
    %v84 = vld [vmem:[#allocation2 + $0x10] sm:$0xff]
    %v85 = vld [vmem:[#allocation2 + $0x18] sm:$0xff]
    %v86 = vld [vmem:[#allocation2 + $0x20] sm:$0xff]
    %v87 = vld [vmem:[#allocation2 + $0x28] sm:$0xff]
    %v88 = vld [vmem:[#allocation2 + $0x30] sm:$0xff]
    %v89 = vld [vmem:[#allocation2 + $0x38] sm:$0xff]
    %v90 = vld [vmem:[#allocation2 + $0x40] sm:$0xff]
    %v91 = vld [vmem:[#allocation2 + $0x48] sm:$0xff]
    %v92 = vld [vmem:[#allocation2 + $0x50] sm:$0xff]
    %v93 = vld [vmem:[#allocation2 + $0x58] sm:$0xff]
    %v94 = vld [vmem:[#allocation2 + $0x60] sm:$0xff]
    %v95 = vld [vmem:[#allocation2 + $0x68] sm:$0xff]
    %v96 = vld [vmem:[#allocation2 + $0x70] sm:$0xff]
    %v97 = vld [vmem:[#allocation2 + $0x78] sm:$0xff]
    %v98 = vld [vmem:[#allocation2 + $0x80] sm:$0xff]
    %v99 = vld [vmem:[#allocation2 + $0x88] sm:$0xff]
    %v100 = vld [vmem:[#allocation2 + $0x90] sm:$0xff]
    %v101 = vld [vmem:[#allocation2 + $0x98] sm:$0xff]
    %v102 = vld [vmem:[#allocation2 + $0xa0] sm:$0xff]
    %v103 = vld [vmem:[#allocation2 + $0xa8] sm:$0xff]
    %v104 = vld [vmem:[#allocation2 + $0xb0] sm:$0xff]
    %v105 = vld [vmem:[#allocation2 + $0xb8] sm:$0xff]
    %v106 = vld [vmem:[#allocation2 + $0xc0] sm:$0xff]
    %v107 = vld [vmem:[#allocation2 + $0xc8] sm:$0xff]
    %v108 = vld [vmem:[#allocation2 + $0xd0] sm:$0xff]
    %v109 = vld [vmem:[#allocation2 + $0xd8] sm:$0xff]
    %v110 = vld [vmem:[#allocation2 + $0xe0] sm:$0xff]
    %v111 = vld [vmem:[#allocation2 + $0xe8] sm:$0xff]
    %v112 = vld [vmem:[#allocation2 + $0xf0] sm:$0xff]
    %v113 = vld [vmem:[#allocation2 + $0xf8] sm:$0xff]
    %v114 = vld [vmem:[#allocation2 + $0x100] sm:$0xff]
    %v115 = vld [vmem:[#allocation2 + $0x108] sm:$0xff]
    %v116 = vld [vmem:[#allocation2 + $0x110] sm:$0xff]
    %v117 = vld [vmem:[#allocation2 + $0x118] sm:$0xff]
    %v118 = vld [vmem:[#allocation2 + $0x120] sm:$0xff]
    %v119 = vld [vmem:[#allocation2 + $0x128] sm:$0xff]
    %v120 = vld [vmem:[#allocation2 + $0x130] sm:$0xff]
    %v121 = vld [vmem:[#allocation2 + $0x138] sm:$0xff]
    %v122 = vld [vmem:[#allocation2 + $0x140] sm:$0xff]
    %v123 = vld [vmem:[#allocation2 + $0x148] sm:$0xff]
    %v124 = vld [vmem:[#allocation2 + $0x150] sm:$0xff]
    %v125 = vld [vmem:[#allocation2 + $0x158] sm:$0xff]
    %v126 = vld [vmem:[#allocation2 + $0x160] sm:$0xff]
    %v127 = vld [vmem:[#allocation2 + $0x168] sm:$0xff]
    %v128 = vld [vmem:[#allocation2 + $0x170] sm:$0xff]
    %v129 = vld [vmem:[#allocation2 + $0x178] sm:$0xff]
    %v130 = vld [vmem:[#allocation2 + $0x180] sm:$0xff]
    %v131 = vld [vmem:[#allocation2 + $0x188] sm:$0xff]
    %v132 = vld [vmem:[#allocation2 + $0x190] sm:$0xff]
    %v133 = vld [vmem:[#allocation2 + $0x198] sm:$0xff]
    %v134 = vld [vmem:[#allocation2 + $0x1a0] sm:$0xff]
    %v135 = vld [vmem:[#allocation2 + $0x1a8] sm:$0xff]
    %v136 = vld [vmem:[#allocation2 + $0x1b0] sm:$0xff]
    %v137 = vld [vmem:[#allocation2 + $0x1b8] sm:$0xff]
    %v138 = vld [vmem:[#allocation2 + $0x1c0] sm:$0xff]
    %v139 = vld [vmem:[#allocation2 + $0x1c8] sm:$0xff]
    %v140 = vld [vmem:[#allocation2 + $0x1d0] sm:$0xff]
    %v141 = vld [vmem:[#allocation2 + $0x1d8] sm:$0xff]
    %v142 = vld [vmem:[#allocation2 + $0x1e0] sm:$0xff]
    %v143 = vld [vmem:[#allocation2 + $0x1e8] sm:$0xff]
    %v144 = vld [vmem:[#allocation2 + $0x1f0] sm:$0xff]
    %v145 = vld [vmem:[#allocation2 + $0x1f8] sm:$0xff]
    %v146 = vld [vmem:[#allocation2 + $0x200] sm:$0xff]
    %v147 = vld [vmem:[#allocation2 + $0x208] sm:$0xff]
    %v148 = vld [vmem:[#allocation2 + $0x210] sm:$0xff]
    %v149 = vld [vmem:[#allocation2 + $0x218] sm:$0xff]
    %v150 = vld [vmem:[#allocation2 + $0x220] sm:$0xff]
    %v151 = vld [vmem:[#allocation2 + $0x228] sm:$0xff]
    %v152 = vld [vmem:[#allocation2 + $0x230] sm:$0xff]
    %v153 = vld [vmem:[#allocation2 + $0x238] sm:$0xff]
    %v154 = vld [vmem:[#allocation2 + $0x240] sm:$0xff]
    %v155 = vld [vmem:[#allocation2 + $0x248] sm:$0xff]
    %v156 = vld [vmem:[#allocation2 + $0x250] sm:$0xff]
    %v157 = vld [vmem:[#allocation2 + $0x258] sm:$0xff]
    %v158 = vld [vmem:[#allocation2 + $0x260] sm:$0xff]
    %v159 = vld [vmem:[#allocation2 + $0x268] sm:$0xff]
    %v160 = vld [vmem:[#allocation2 + $0x270] sm:$0xff]
    %v161 = vld [vmem:[#allocation2 + $0x278] sm:$0xff]
    %v162 = vld [vmem:[#allocation2 + $0x280] sm:$0xff]
    %v163 = vld [vmem:[#allocation2 + $0x288] sm:$0xff]
    %v164 = vld [vmem:[#allocation2 + $0x290] sm:$0xff]
    %v165 = vld [vmem:[#allocation2 + $0x298] sm:$0xff]
    %v166 = vld [vmem:[#allocation2 + $0x2a0] sm:$0xff]
    %v167 = vld [vmem:[#allocation2 + $0x2a8] sm:$0xff]
    %v168 = vld [vmem:[#allocation2 + $0x2b0] sm:$0xff]
    %v169 = vld [vmem:[#allocation2 + $0x2b8] sm:$0xff]
    %v170 = vld [vmem:[#allocation2 + $0x2c0] sm:$0xff]
    %v171 = vld [vmem:[#allocation2 + $0x2c8] sm:$0xff]
    %v172 = vld [vmem:[#allocation2 + $0x2d0] sm:$0xff]
    %v173 = vld [vmem:[#allocation2 + $0x2d8] sm:$0xff]
    %v174 = vld [vmem:[#allocation2 + $0x2e0] sm:$0xff]
    %v175 = vld [vmem:[#allocation2 + $0x2e8] sm:$0xff]
    %v176 = vld [vmem:[#allocation2 + $0x2f0] sm:$0xff]
    %v177 = vld [vmem:[#allocation2 + $0x2f8] sm:$0xff]
    %v178 = vld [vmem:[#allocation2 + $0x300] sm:$0xff]
    %v179 = vld [vmem:[#allocation2 + $0x308] sm:$0xff]
    %v180 = vld [vmem:[#allocation2 + $0x310] sm:$0xff]
    %v181 = vld [vmem:[#allocation2 + $0x318] sm:$0xff]
    %v182 = vld [vmem:[#allocation2 + $0x320] sm:$0xff]
    %v183 = vld [vmem:[#allocation2 + $0x328] sm:$0xff]
    %v184 = vld [vmem:[#allocation2 + $0x330] sm:$0xff]
    %v185 = vld [vmem:[#allocation2 + $0x338] sm:$0xff]
    %v186 = vld [vmem:[#allocation2 + $0x340] sm:$0xff]
    %v187 = vld [vmem:[#allocation2 + $0x348] sm:$0xff]
    %v188 = vld [vmem:[#allocation2 + $0x350] sm:$0xff]
    %v189 = vld [vmem:[#allocation2 + $0x358] sm:$0xff]
    %v190 = vld [vmem:[#allocation2 + $0x360] sm:$0xff]
    %v191 = vld [vmem:[#allocation2 + $0x368] sm:$0xff]
    %v192 = vld [vmem:[#allocation2 + $0x370] sm:$0xff]
    %v193 = vld [vmem:[#allocation2 + $0x378] sm:$0xff]
    %v194 = vld [vmem:[#allocation2 + $0x380] sm:$0xff]
    %v195 = vld [vmem:[#allocation2 + $0x388] sm:$0xff]
    %v196 = vld [vmem:[#allocation2 + $0x390] sm:$0xff]
    %v197 = vld [vmem:[#allocation2 + $0x398] sm:$0xff]
    %v198 = vld [vmem:[#allocation2 + $0x3a0] sm:$0xff]
    %v199 = vld [vmem:[#allocation2 + $0x3a8] sm:$0xff]
    %v200 = vld [vmem:[#allocation2 + $0x3b0] sm:$0xff]
    %v201 = vld [vmem:[#allocation2 + $0x3b8] sm:$0xff]
    %v202 = vld [vmem:[#allocation2 + $0x3c0] sm:$0xff]
    %v203 = vld [vmem:[#allocation2 + $0x3c8] sm:$0xff]
    %v204 = vld [vmem:[#allocation2 + $0x3d0] sm:$0xff]
    %v205 = vld [vmem:[#allocation2 + $0x3d8] sm:$0xff]
    %v206 = vld [vmem:[#allocation2 + $0x3e0] sm:$0xff]
    %v207 = vld [vmem:[#allocation2 + $0x3e8] sm:$0xff]
    %v208 = vld [vmem:[#allocation2 + $0x3f0] sm:$0xff]
    %v209 = vld [vmem:[#allocation2 + $0x3f8] sm:$0xff]
    %v210 = vld [vmem:[#allocation2 + $0x400] sm:$0xff]
    %v211 = vld [vmem:[#allocation2 + $0x408] sm:$0xff]
    %v212 = vld [vmem:[#allocation2 + $0x410] sm:$0xff]
    %v213 = vld [vmem:[#allocation2 + $0x418] sm:$0xff]
    %v214 = vld [vmem:[#allocation2 + $0x420] sm:$0xff]
    %v215 = vld [vmem:[#allocation2 + $0x428] sm:$0xff]
    %v216 = vld [vmem:[#allocation2 + $0x430] sm:$0xff]
    %v217 = vld [vmem:[#allocation2 + $0x438] sm:$0xff]
    %v218 = vld [vmem:[#allocation2 + $0x440] sm:$0xff]
    %v219 = vld [vmem:[#allocation2 + $0x448] sm:$0xff]
    %v220 = vld [vmem:[#allocation2 + $0x450] sm:$0xff]
    %v221 = vld [vmem:[#allocation2 + $0x458] sm:$0xff]
    %v222 = vld [vmem:[#allocation2 + $0x460] sm:$0xff]
    %v223 = vld [vmem:[#allocation2 + $0x468] sm:$0xff]
    %v224 = vld [vmem:[#allocation2 + $0x470] sm:$0xff]
    %v225 = vld [vmem:[#allocation2 + $0x478] sm:$0xff]
    %v226 = vld [vmem:[#allocation2 + $0x480] sm:$0xff]
    %v227 = vld [vmem:[#allocation2 + $0x488] sm:$0xff]
    %v228 = vld [vmem:[#allocation2 + $0x490] sm:$0xff]
    %v229 = vld [vmem:[#allocation2 + $0x498] sm:$0xff]
    %v230 = vld [vmem:[#allocation2 + $0x4a0] sm:$0xff]
    %v231 = vld [vmem:[#allocation2 + $0x4a8] sm:$0xff]
    %v232 = vld [vmem:[#allocation2 + $0x4b0] sm:$0xff]
    %v233 = vld [vmem:[#allocation2 + $0x4b8] sm:$0xff]
    %v234 = vld [vmem:[#allocation2 + $0x4c0] sm:$0xff]
    %v235 = vld [vmem:[#allocation2 + $0x4c8] sm:$0xff]
    %v236 = vld [vmem:[#allocation2 + $0x4d0] sm:$0xff]
    %v237 = vld [vmem:[#allocation2 + $0x4d8] sm:$0xff]
    %v238 = vld [vmem:[#allocation2 + $0x4e0] sm:$0xff]
    %v239 = vld [vmem:[#allocation2 + $0x4e8] sm:$0xff]
    %v240 = vld [vmem:[#allocation2 + $0x4f0] sm:$0xff]
    %v241 = vld [vmem:[#allocation2 + $0x4f8] sm:$0xff]
    %v242 = vld [vmem:[#allocation2 + $0x500] sm:$0xff]
    %v243 = vld [vmem:[#allocation2 + $0x508] sm:$0xff]
    %v244 = vld [vmem:[#allocation2 + $0x510] sm:$0xff]
    %v245 = vld [vmem:[#allocation2 + $0x518] sm:$0xff]
    %v246 = vld [vmem:[#allocation2 + $0x520] sm:$0xff]
    %v247 = vld [vmem:[#allocation2 + $0x528] sm:$0xff]
    %v248 = vld [vmem:[#allocation2 + $0x530] sm:$0xff]
    %v249 = vld [vmem:[#allocation2 + $0x538] sm:$0xff]
    %v250 = vld [vmem:[#allocation2 + $0x540] sm:$0xff]
    %v251 = vld [vmem:[#allocation2 + $0x548] sm:$0xff]
    %v252 = vld [vmem:[#allocation2 + $0x550] sm:$0xff]
    %v253 = vld [vmem:[#allocation2 + $0x558] sm:$0xff]
    %v254 = vld [vmem:[#allocation2 + $0x560] sm:$0xff]
    %v255 = vld [vmem:[#allocation2 + $0x568] sm:$0xff]
    %v256 = vld [vmem:[#allocation2 + $0x570] sm:$0xff]
    %v257 = vld [vmem:[#allocation2 + $0x578] sm:$0xff]
    %v258 = vld [vmem:[#allocation2 + $0x580] sm:$0xff]
    %v259 = vld [vmem:[#allocation2 + $0x588] sm:$0xff]
    %v260 = vld [vmem:[#allocation2 + $0x590] sm:$0xff]
    %v261 = vld [vmem:[#allocation2 + $0x598] sm:$0xff]
    %v262 = vld [vmem:[#allocation2 + $0x5a0] sm:$0xff]
    %v263 = vld [vmem:[#allocation2 + $0x5a8] sm:$0xff]
    %v264 = vld [vmem:[#allocation2 + $0x5b0] sm:$0xff]
    %v265 = vld [vmem:[#allocation2 + $0x5b8] sm:$0xff]
    %v266 = vld [vmem:[#allocation2 + $0x5c0] sm:$0xff]
    %v267 = vld [vmem:[#allocation2 + $0x5c8] sm:$0xff]
    %v268 = vld [vmem:[#allocation2 + $0x5d0] sm:$0xff]
    %v269 = vld [vmem:[#allocation2 + $0x5d8] sm:$0xff]
    %v270 = vld [vmem:[#allocation2 + $0x5e0] sm:$0xff]
    %v271 = vld [vmem:[#allocation2 + $0x5e8] sm:$0xff]
    %v272 = vld [vmem:[#allocation2 + $0x5f0] sm:$0xff]
    %v273 = vld [vmem:[#allocation2 + $0x5f8] sm:$0xff]
    %v274 = vld [vmem:[#allocation2 + $0x600] sm:$0xff]
    %v275 = vld [vmem:[#allocation2 + $0x608] sm:$0xff]
    %v276 = vld [vmem:[#allocation2 + $0x610] sm:$0xff]
    %v277 = vld [vmem:[#allocation2 + $0x618] sm:$0xff]
    %v278 = vld [vmem:[%s2] sm:$0xf]
    %v280 = vlaneseq
    %v281 = vshrl.u32 %v280, 7
    %v282 = vsub.s32 0, %v281
    %v283 = vrot.slane %v278, %v282
    %v284 = vlaneseq
    %v285 = vshrl.u32 %v284, 7
    %v286 = vsub.s32 1, %v285
    %v287 = vrot.slane %v278, %v286
    %v288 = vlaneseq
    %v289 = vshrl.u32 %v288, 7
    %v290 = vsub.s32 2, %v289
    %v291 = vrot.slane %v278, %v290
    %v292 = vlaneseq
    %v293 = vshrl.u32 %v292, 7
    %v294 = vsub.s32 3, %v293
    %v295 = vrot.slane %v278, %v294
    %v496 = vunpack.c.l.b16 %v82
    %v497 = vunpack.c.h.b16 %v82
    %v498 = vunpack.c.l.b16 %v83
    %v499 = vunpack.c.h.b16 %v83
    %v500 = vunpack.c.l.b16 %v84
    %v501 = vunpack.c.h.b16 %v84
    %v502 = vunpack.c.l.b16 %v85
    %v503 = vunpack.c.h.b16 %v85
    %v504 = vunpack.c.l.b16 %v86
    %v505 = vunpack.c.h.b16 %v86
    %v506 = vunpack.c.l.b16 %v87
    %v507 = vunpack.c.h.b16 %v87
    %v508 = vunpack.c.l.b16 %v88
    %v509 = vunpack.c.h.b16 %v88
    %v510 = vunpack.c.l.b16 %v89
    %v511 = vunpack.c.h.b16 %v89
    %v512 = vunpack.c.l.b16 %v90
    %v513 = vunpack.c.h.b16 %v90
    %v514 = vunpack.c.l.b16 %v91
    %v515 = vunpack.c.h.b16 %v91
    %v516 = vunpack.c.l.b16 %v92
    %v517 = vunpack.c.h.b16 %v92
    %v518 = vunpack.c.l.b16 %v93
    %v519 = vunpack.c.h.b16 %v93
    %v520 = vunpack.c.l.b16 %v94
    %v521 = vunpack.c.h.b16 %v94
    %v522 = vunpack.c.l.b16 %v95
    %v523 = vunpack.c.h.b16 %v95
    %v524 = vunpack.c.l.b16 %v96
    %v525 = vunpack.c.h.b16 %v96
    %v526 = vunpack.c.l.b16 %v97
    %v527 = vunpack.c.h.b16 %v97
    %v528 = vunpack.c.l.b16 %v98
    %v529 = vunpack.c.h.b16 %v98
    %v530 = vunpack.c.l.b16 %v99
    %v531 = vunpack.c.h.b16 %v99
    %v532 = vunpack.c.l.b16 %v100
    %v533 = vunpack.c.h.b16 %v100
    %v534 = vunpack.c.l.b16 %v101
    %v535 = vunpack.c.h.b16 %v101
    %v536 = vunpack.c.l.b16 %v102
    %v537 = vunpack.c.h.b16 %v102
    %v538 = vunpack.c.l.b16 %v103
    %v539 = vunpack.c.h.b16 %v103
    %v540 = vunpack.c.l.b16 %v104
    %v541 = vunpack.c.h.b16 %v104
    %v542 = vunpack.c.l.b16 %v105
    %v543 = vunpack.c.h.b16 %v105
    %v544 = vunpack.c.l.b16 %v106
    %v545 = vunpack.c.h.b16 %v106
    %v546 = vunpack.c.l.b16 %v107
    %v547 = vunpack.c.h.b16 %v107
    %v548 = vunpack.c.l.b16 %v108
    %v549 = vunpack.c.h.b16 %v108
    %v550 = vunpack.c.l.b16 %v109
    %v551 = vunpack.c.h.b16 %v109
    %v552 = vunpack.c.l.b16 %v110
    %v553 = vunpack.c.h.b16 %v110
    %v554 = vunpack.c.l.b16 %v111
    %v555 = vunpack.c.h.b16 %v111
    %v556 = vunpack.c.l.b16 %v112
    %v557 = vunpack.c.h.b16 %v112
    %v558 = vunpack.c.l.b16 %v113
    %v559 = vunpack.c.h.b16 %v113
    %v560 = vunpack.c.l.b16 %v114
    %v561 = vunpack.c.h.b16 %v114
    %v562 = vunpack.c.l.b16 %v115
    %v563 = vunpack.c.h.b16 %v115
    %v564 = vunpack.c.l.b16 %v116
    %v565 = vunpack.c.h.b16 %v116
    %v566 = vunpack.c.l.b16 %v117
    %v567 = vunpack.c.h.b16 %v117
    %v568 = vunpack.c.l.b16 %v118
    %v569 = vunpack.c.h.b16 %v118
    %v570 = vunpack.c.l.b16 %v119
    %v571 = vunpack.c.h.b16 %v119
    %v572 = vunpack.c.l.b16 %v120
    %v573 = vunpack.c.h.b16 %v120
    %v574 = vunpack.c.l.b16 %v121
    %v575 = vunpack.c.h.b16 %v121
    %v576 = vunpack.c.l.b16 %v122
    %v577 = vunpack.c.h.b16 %v122
    %v578 = vunpack.c.l.b16 %v123
    %v579 = vunpack.c.h.b16 %v123
    %v580 = vunpack.c.l.b16 %v124
    %v581 = vunpack.c.h.b16 %v124
    %v582 = vunpack.c.l.b16 %v125
    %v583 = vunpack.c.h.b16 %v125
    %v584 = vunpack.c.l.b16 %v126
    %v585 = vunpack.c.h.b16 %v126
    %v586 = vunpack.c.l.b16 %v127
    %v587 = vunpack.c.h.b16 %v127
    %v588 = vunpack.c.l.b16 %v128
    %v589 = vunpack.c.h.b16 %v128
    %v590 = vunpack.c.l.b16 %v129
    %v591 = vunpack.c.h.b16 %v129
    %v592 = vunpack.c.l.b16 %v130
    %v593 = vunpack.c.h.b16 %v130
    %v594 = vunpack.c.l.b16 %v131
    %v595 = vunpack.c.h.b16 %v131
    %v596 = vunpack.c.l.b16 %v132
    %v597 = vunpack.c.h.b16 %v132
    %v598 = vunpack.c.l.b16 %v133
    %v599 = vunpack.c.h.b16 %v133
    %v600 = vunpack.c.l.b16 %v134
    %v601 = vunpack.c.h.b16 %v134
    %v602 = vunpack.c.l.b16 %v135
    %v603 = vunpack.c.h.b16 %v135
    %v604 = vunpack.c.l.b16 %v136
    %v605 = vunpack.c.h.b16 %v136
    %v606 = vunpack.c.l.b16 %v137
    %v607 = vunpack.c.h.b16 %v137
    %v608 = vunpack.c.l.b16 %v138
    %v609 = vunpack.c.h.b16 %v138
    %v610 = vunpack.c.l.b16 %v139
    %v611 = vunpack.c.h.b16 %v139
    %v612 = vunpack.c.l.b16 %v140
    %v613 = vunpack.c.h.b16 %v140
    %v614 = vunpack.c.l.b16 %v141
    %v615 = vunpack.c.h.b16 %v141
    %v616 = vunpack.c.l.b16 %v142
    %v617 = vunpack.c.h.b16 %v142
    %v618 = vunpack.c.l.b16 %v143
    %v619 = vunpack.c.h.b16 %v143
    %v620 = vunpack.c.l.b16 %v144
    %v621 = vunpack.c.h.b16 %v144
    %v622 = vunpack.c.l.b16 %v145
    %v623 = vunpack.c.h.b16 %v145
    %v624 = vunpack.c.l.b16 %v146
    %v625 = vunpack.c.h.b16 %v146
    %v626 = vunpack.c.l.b16 %v147
    %v627 = vunpack.c.h.b16 %v147
    %v628 = vunpack.c.l.b16 %v148
    %v629 = vunpack.c.h.b16 %v148
    %v630 = vunpack.c.l.b16 %v149
    %v631 = vunpack.c.h.b16 %v149
    %v632 = vunpack.c.l.b16 %v150
    %v633 = vunpack.c.h.b16 %v150
    %v634 = vunpack.c.l.b16 %v151
    %v635 = vunpack.c.h.b16 %v151
    %v636 = vunpack.c.l.b16 %v152
    %v637 = vunpack.c.h.b16 %v152
    %v638 = vunpack.c.l.b16 %v153
    %v639 = vunpack.c.h.b16 %v153
    %v640 = vunpack.c.l.b16 %v154
    %v641 = vunpack.c.h.b16 %v154
    %v642 = vunpack.c.l.b16 %v155
    %v643 = vunpack.c.h.b16 %v155
    %v644 = vunpack.c.l.b16 %v156
    %v645 = vunpack.c.h.b16 %v156
    %v646 = vunpack.c.l.b16 %v157
    %v647 = vunpack.c.h.b16 %v157
    %v648 = vunpack.c.l.b16 %v158
    %v649 = vunpack.c.h.b16 %v158
    %v650 = vunpack.c.l.b16 %v159
    %v651 = vunpack.c.h.b16 %v159
    %v652 = vunpack.c.l.b16 %v160
    %v653 = vunpack.c.h.b16 %v160
    %v654 = vunpack.c.l.b16 %v161
    %v655 = vunpack.c.h.b16 %v161
    %v656 = vunpack.c.l.b16 %v162
    %v657 = vunpack.c.h.b16 %v162
    %v658 = vunpack.c.l.b16 %v163
    %v659 = vunpack.c.h.b16 %v163
    %v660 = vunpack.c.l.b16 %v164
    %v661 = vunpack.c.h.b16 %v164
    %v662 = vunpack.c.l.b16 %v165
    %v663 = vunpack.c.h.b16 %v165
    %v664 = vunpack.c.l.b16 %v166
    %v665 = vunpack.c.h.b16 %v166
    %v666 = vunpack.c.l.b16 %v167
    %v667 = vunpack.c.h.b16 %v167
    %v668 = vunpack.c.l.b16 %v168
    %v669 = vunpack.c.h.b16 %v168
    %v670 = vunpack.c.l.b16 %v169
    %v671 = vunpack.c.h.b16 %v169
    %v672 = vunpack.c.l.b16 %v170
    %v673 = vunpack.c.h.b16 %v170
    %v674 = vunpack.c.l.b16 %v171
    %v675 = vunpack.c.h.b16 %v171
    %v676 = vunpack.c.l.b16 %v172
    %v677 = vunpack.c.h.b16 %v172
    %v678 = vunpack.c.l.b16 %v173
    %v679 = vunpack.c.h.b16 %v173
    %v680 = vunpack.c.l.b16 %v174
    %v681 = vunpack.c.h.b16 %v174
    %v682 = vunpack.c.l.b16 %v175
    %v683 = vunpack.c.h.b16 %v175
    %v684 = vunpack.c.l.b16 %v176
    %v685 = vunpack.c.h.b16 %v176
    %v686 = vunpack.c.l.b16 %v177
    %v687 = vunpack.c.h.b16 %v177
    %v688 = vunpack.c.l.b16 %v178
    %v689 = vunpack.c.h.b16 %v178
    %v690 = vunpack.c.l.b16 %v179
    %v691 = vunpack.c.h.b16 %v179
    %v692 = vunpack.c.l.b16 %v180
    %v693 = vunpack.c.h.b16 %v180
    %v694 = vunpack.c.l.b16 %v181
    %v695 = vunpack.c.h.b16 %v181
    %v696 = vunpack.c.l.b16 %v182
    %v697 = vunpack.c.h.b16 %v182
    %v698 = vunpack.c.l.b16 %v183
    %v699 = vunpack.c.h.b16 %v183
    %v700 = vunpack.c.l.b16 %v184
    %v701 = vunpack.c.h.b16 %v184
    %v702 = vunpack.c.l.b16 %v185
    %v703 = vunpack.c.h.b16 %v185
    %v704 = vunpack.c.l.b16 %v186
    %v705 = vunpack.c.h.b16 %v186
    %v706 = vunpack.c.l.b16 %v187
    %v707 = vunpack.c.h.b16 %v187
    %v708 = vunpack.c.l.b16 %v188
    %v709 = vunpack.c.h.b16 %v188
    %v710 = vunpack.c.l.b16 %v189
    %v711 = vunpack.c.h.b16 %v189
    %v712 = vunpack.c.l.b16 %v190
    %v713 = vunpack.c.h.b16 %v190
    %v714 = vunpack.c.l.b16 %v191
    %v715 = vunpack.c.h.b16 %v191
    %v716 = vunpack.c.l.b16 %v192
    %v717 = vunpack.c.h.b16 %v192
    %v718 = vunpack.c.l.b16 %v193
    %v719 = vunpack.c.h.b16 %v193
    %v720 = vunpack.c.l.b16 %v194
    %v721 = vunpack.c.h.b16 %v194
    %v722 = vunpack.c.l.b16 %v195
    %v723 = vunpack.c.h.b16 %v195
    %v724 = vunpack.c.l.b16 %v196
    %v725 = vunpack.c.h.b16 %v196
    %v726 = vunpack.c.l.b16 %v197
    %v727 = vunpack.c.h.b16 %v197
    %v728 = vunpack.c.l.b16 %v198
    %v729 = vunpack.c.h.b16 %v198
    %v730 = vunpack.c.l.b16 %v199
    %v731 = vunpack.c.h.b16 %v199
    %v732 = vunpack.c.l.b16 %v200
    %v733 = vunpack.c.h.b16 %v200
    %v734 = vunpack.c.l.b16 %v201
    %v735 = vunpack.c.h.b16 %v201
    %v736 = vunpack.c.l.b16 %v202
    %v737 = vunpack.c.h.b16 %v202
    %v738 = vunpack.c.l.b16 %v203
    %v739 = vunpack.c.h.b16 %v203
    %v740 = vunpack.c.l.b16 %v204
    %v741 = vunpack.c.h.b16 %v204
    %v742 = vunpack.c.l.b16 %v205
    %v743 = vunpack.c.h.b16 %v205
    %v744 = vunpack.c.l.b16 %v206
    %v745 = vunpack.c.h.b16 %v206
    %v746 = vunpack.c.l.b16 %v207
    %v747 = vunpack.c.h.b16 %v207
    %v748 = vunpack.c.l.b16 %v208
    %v749 = vunpack.c.h.b16 %v208
    %v750 = vunpack.c.l.b16 %v209
    %v751 = vunpack.c.h.b16 %v209
    %v752 = vunpack.c.l.b16 %v210
    %v753 = vunpack.c.h.b16 %v210
    %v754 = vunpack.c.l.b16 %v211
    %v755 = vunpack.c.h.b16 %v211
    %v756 = vunpack.c.l.b16 %v212
    %v757 = vunpack.c.h.b16 %v212
    %v758 = vunpack.c.l.b16 %v213
    %v759 = vunpack.c.h.b16 %v213
    %v760 = vunpack.c.l.b16 %v214
    %v761 = vunpack.c.h.b16 %v214
    %v762 = vunpack.c.l.b16 %v215
    %v763 = vunpack.c.h.b16 %v215
    %v764 = vunpack.c.l.b16 %v216
    %v765 = vunpack.c.h.b16 %v216
    %v766 = vunpack.c.l.b16 %v217
    %v767 = vunpack.c.h.b16 %v217
    %v768 = vunpack.c.l.b16 %v218
    %v769 = vunpack.c.h.b16 %v218
    %v770 = vunpack.c.l.b16 %v219
    %v771 = vunpack.c.h.b16 %v219
    %v772 = vunpack.c.l.b16 %v220
    %v773 = vunpack.c.h.b16 %v220
    %v774 = vunpack.c.l.b16 %v221
    %v775 = vunpack.c.h.b16 %v221
    %v776 = vunpack.c.l.b16 %v222
    %v777 = vunpack.c.h.b16 %v222
    %v778 = vunpack.c.l.b16 %v223
    %v779 = vunpack.c.h.b16 %v223
    %v780 = vunpack.c.l.b16 %v224
    %v781 = vunpack.c.h.b16 %v224
    %v782 = vunpack.c.l.b16 %v225
    %v783 = vunpack.c.h.b16 %v225
    %v784 = vunpack.c.l.b16 %v226
    %v785 = vunpack.c.h.b16 %v226
    %v786 = vunpack.c.l.b16 %v227
    %v787 = vunpack.c.h.b16 %v227
    %v788 = vunpack.c.l.b16 %v228
    %v789 = vunpack.c.h.b16 %v228
    %v790 = vunpack.c.l.b16 %v229
    %v791 = vunpack.c.h.b16 %v229
    %v792 = vunpack.c.l.b16 %v230
    %v793 = vunpack.c.h.b16 %v230
    %v794 = vunpack.c.l.b16 %v231
    %v795 = vunpack.c.h.b16 %v231
    %v796 = vunpack.c.l.b16 %v232
    %v797 = vunpack.c.h.b16 %v232
    %v798 = vunpack.c.l.b16 %v233
    %v799 = vunpack.c.h.b16 %v233
    %v800 = vunpack.c.l.b16 %v234
    %v801 = vunpack.c.h.b16 %v234
    %v802 = vunpack.c.l.b16 %v235
    %v803 = vunpack.c.h.b16 %v235
    %v804 = vunpack.c.l.b16 %v236
    %v805 = vunpack.c.h.b16 %v236
    %v806 = vunpack.c.l.b16 %v237
    %v807 = vunpack.c.h.b16 %v237
    %v808 = vunpack.c.l.b16 %v238
    %v809 = vunpack.c.h.b16 %v238
    %v810 = vunpack.c.l.b16 %v239
    %v811 = vunpack.c.h.b16 %v239
    %v812 = vunpack.c.l.b16 %v240
    %v813 = vunpack.c.h.b16 %v240
    %v814 = vunpack.c.l.b16 %v241
    %v815 = vunpack.c.h.b16 %v241
    %v816 = vunpack.c.l.b16 %v242
    %v817 = vunpack.c.h.b16 %v242
    %v818 = vunpack.c.l.b16 %v243
    %v819 = vunpack.c.h.b16 %v243
    %v820 = vunpack.c.l.b16 %v244
    %v821 = vunpack.c.h.b16 %v244
    %v822 = vunpack.c.l.b16 %v245
    %v823 = vunpack.c.h.b16 %v245
    %v824 = vunpack.c.l.b16 %v246
    %v825 = vunpack.c.h.b16 %v246
    %v826 = vunpack.c.l.b16 %v247
    %v827 = vunpack.c.h.b16 %v247
    %v828 = vunpack.c.l.b16 %v248
    %v829 = vunpack.c.h.b16 %v248
    %v830 = vunpack.c.l.b16 %v249
    %v831 = vunpack.c.h.b16 %v249
    %v832 = vunpack.c.l.b16 %v250
    %v833 = vunpack.c.h.b16 %v250
    %v834 = vunpack.c.l.b16 %v251
    %v835 = vunpack.c.h.b16 %v251
    %v836 = vunpack.c.l.b16 %v252
    %v837 = vunpack.c.h.b16 %v252
    %v838 = vunpack.c.l.b16 %v253
    %v839 = vunpack.c.h.b16 %v253
    %v840 = vunpack.c.l.b16 %v254
    %v841 = vunpack.c.h.b16 %v254
    %v842 = vunpack.c.l.b16 %v255
    %v843 = vunpack.c.h.b16 %v255
    %v844 = vunpack.c.l.b16 %v256
    %v845 = vunpack.c.h.b16 %v256
    %v846 = vunpack.c.l.b16 %v257
    %v847 = vunpack.c.h.b16 %v257
    %v848 = vunpack.c.l.b16 %v258
    %v849 = vunpack.c.h.b16 %v258
    %v850 = vunpack.c.l.b16 %v259
    %v851 = vunpack.c.h.b16 %v259
    %v852 = vunpack.c.l.b16 %v260
    %v853 = vunpack.c.h.b16 %v260
    %v854 = vunpack.c.l.b16 %v261
    %v855 = vunpack.c.h.b16 %v261
    %v856 = vunpack.c.l.b16 %v262
    %v857 = vunpack.c.h.b16 %v262
    %v858 = vunpack.c.l.b16 %v263
    %v859 = vunpack.c.h.b16 %v263
    %v860 = vunpack.c.l.b16 %v264
    %v861 = vunpack.c.h.b16 %v264
    %v862 = vunpack.c.l.b16 %v265
    %v863 = vunpack.c.h.b16 %v265
    %v864 = vunpack.c.l.b16 %v266
    %v865 = vunpack.c.h.b16 %v266
    %v866 = vunpack.c.l.b16 %v267
    %v867 = vunpack.c.h.b16 %v267
    %v868 = vunpack.c.l.b16 %v268
    %v869 = vunpack.c.h.b16 %v268
    %v870 = vunpack.c.l.b16 %v269
    %v871 = vunpack.c.h.b16 %v269
    %v872 = vunpack.c.l.b16 %v270
    %v873 = vunpack.c.h.b16 %v270
    %v874 = vunpack.c.l.b16 %v271
    %v875 = vunpack.c.h.b16 %v271
    %v876 = vunpack.c.l.b16 %v272
    %v877 = vunpack.c.h.b16 %v272
    %v878 = vunpack.c.l.b16 %v273
    %v879 = vunpack.c.h.b16 %v273
    %v880 = vunpack.c.l.b16 %v274
    %v881 = vunpack.c.h.b16 %v274
    %v882 = vunpack.c.l.b16 %v275
    %v883 = vunpack.c.h.b16 %v275
    %v884 = vunpack.c.l.b16 %v276
    %v885 = vunpack.c.h.b16 %v276
    %v886 = vunpack.c.l.b16 %v277
    %v887 = vunpack.c.h.b16 %v277
    %v888 = vpack.c.b16 %v500, %v496
    %v889 = vpack.c.b16 %v501, %v497
    %v890 = vpack.c.b16 %v502, %v498
    %v891 = vpack.c.b16 %v503, %v499
    %v892 = vpack.c.b16 %v508, %v504
    %v893 = vpack.c.b16 %v509, %v505
    %v894 = vpack.c.b16 %v510, %v506
    %v895 = vpack.c.b16 %v511, %v507
    %v896 = vpack.c.b16 %v516, %v512
    %v897 = vpack.c.b16 %v517, %v513
    %v898 = vpack.c.b16 %v518, %v514
    %v899 = vpack.c.b16 %v519, %v515
    %v900 = vpack.c.b16 %v524, %v520
    %v901 = vpack.c.b16 %v525, %v521
    %v902 = vpack.c.b16 %v526, %v522
    %v903 = vpack.c.b16 %v527, %v523
    %v904 = vpack.c.b16 %v532, %v528
    %v905 = vpack.c.b16 %v533, %v529
    %v906 = vpack.c.b16 %v534, %v530
    %v907 = vpack.c.b16 %v535, %v531
    %v908 = vpack.c.b16 %v540, %v536
    %v909 = vpack.c.b16 %v541, %v537
    %v910 = vpack.c.b16 %v542, %v538
    %v911 = vpack.c.b16 %v543, %v539
    %v912 = vpack.c.b16 %v548, %v544
    %v913 = vpack.c.b16 %v549, %v545
    %v914 = vpack.c.b16 %v550, %v546
    %v915 = vpack.c.b16 %v551, %v547
    %v916 = vpack.c.b16 %v556, %v552
    %v917 = vpack.c.b16 %v557, %v553
    %v918 = vpack.c.b16 %v558, %v554
    %v919 = vpack.c.b16 %v559, %v555
    %v920 = vpack.c.b16 %v564, %v560
    %v921 = vpack.c.b16 %v565, %v561
    %v922 = vpack.c.b16 %v566, %v562
    %v923 = vpack.c.b16 %v567, %v563
    %v924 = vpack.c.b16 %v572, %v568
    %v925 = vpack.c.b16 %v573, %v569
    %v926 = vpack.c.b16 %v574, %v570
    %v927 = vpack.c.b16 %v575, %v571
    %v928 = vpack.c.b16 %v580, %v576
    %v929 = vpack.c.b16 %v581, %v577
    %v930 = vpack.c.b16 %v582, %v578
    %v931 = vpack.c.b16 %v583, %v579
    %v932 = vpack.c.b16 %v588, %v584
    %v933 = vpack.c.b16 %v589, %v585
    %v934 = vpack.c.b16 %v590, %v586
    %v935 = vpack.c.b16 %v591, %v587
    %v936 = vpack.c.b16 %v596, %v592
    %v937 = vpack.c.b16 %v597, %v593
    %v938 = vpack.c.b16 %v598, %v594
    %v939 = vpack.c.b16 %v599, %v595
    %v940 = vpack.c.b16 %v604, %v600
    %v941 = vpack.c.b16 %v605, %v601
    %v942 = vpack.c.b16 %v606, %v602
    %v943 = vpack.c.b16 %v607, %v603
    %v944 = vpack.c.b16 %v612, %v608
    %v945 = vpack.c.b16 %v613, %v609
    %v946 = vpack.c.b16 %v614, %v610
    %v947 = vpack.c.b16 %v615, %v611
    %v948 = vpack.c.b16 %v620, %v616
    %v949 = vpack.c.b16 %v621, %v617
    %v950 = vpack.c.b16 %v622, %v618
    %v951 = vpack.c.b16 %v623, %v619
    %v952 = vpack.c.b16 %v628, %v624
    %v953 = vpack.c.b16 %v629, %v625
    %v954 = vpack.c.b16 %v630, %v626
    %v955 = vpack.c.b16 %v631, %v627
    %v956 = vpack.c.b16 %v636, %v632
    %v957 = vpack.c.b16 %v637, %v633
    %v958 = vpack.c.b16 %v638, %v634
    %v959 = vpack.c.b16 %v639, %v635
    %v960 = vpack.c.b16 %v644, %v640
    %v961 = vpack.c.b16 %v645, %v641
    %v962 = vpack.c.b16 %v646, %v642
    %v963 = vpack.c.b16 %v647, %v643
    %v964 = vpack.c.b16 %v652, %v648
    %v965 = vpack.c.b16 %v653, %v649
    %v966 = vpack.c.b16 %v654, %v650
    %v967 = vpack.c.b16 %v655, %v651
    %v968 = vpack.c.b16 %v660, %v656
    %v969 = vpack.c.b16 %v661, %v657
    %v970 = vpack.c.b16 %v662, %v658
    %v971 = vpack.c.b16 %v663, %v659
    %v972 = vpack.c.b16 %v668, %v664
    %v973 = vpack.c.b16 %v669, %v665
    %v974 = vpack.c.b16 %v670, %v666
    %v975 = vpack.c.b16 %v671, %v667
    %v976 = vpack.c.b16 %v676, %v672
    %v977 = vpack.c.b16 %v677, %v673
    %v978 = vpack.c.b16 %v678, %v674
    %v979 = vpack.c.b16 %v679, %v675
    %v980 = vpack.c.b16 %v684, %v680
    %v981 = vpack.c.b16 %v685, %v681
    %v982 = vpack.c.b16 %v686, %v682
    %v983 = vpack.c.b16 %v687, %v683
    %v984 = vpack.c.b16 %v692, %v688
    %v985 = vpack.c.b16 %v693, %v689
    %v986 = vpack.c.b16 %v694, %v690
    %v987 = vpack.c.b16 %v695, %v691
    %v988 = vpack.c.b16 %v700, %v696
    %v989 = vpack.c.b16 %v701, %v697
    %v990 = vpack.c.b16 %v702, %v698
    %v991 = vpack.c.b16 %v703, %v699
    %v992 = vpack.c.b16 %v708, %v704
    %v993 = vpack.c.b16 %v709, %v705
    %v994 = vpack.c.b16 %v710, %v706
    %v995 = vpack.c.b16 %v711, %v707
    %v996 = vpack.c.b16 %v716, %v712
    %v997 = vpack.c.b16 %v717, %v713
    %v998 = vpack.c.b16 %v718, %v714
    %v999 = vpack.c.b16 %v719, %v715
    %v1000 = vpack.c.b16 %v724, %v720
    %v1001 = vpack.c.b16 %v725, %v721
    %v1002 = vpack.c.b16 %v726, %v722
    %v1003 = vpack.c.b16 %v727, %v723
    %v1004 = vpack.c.b16 %v732, %v728
    %v1005 = vpack.c.b16 %v733, %v729
    %v1006 = vpack.c.b16 %v734, %v730
    %v1007 = vpack.c.b16 %v735, %v731
    %v1008 = vpack.c.b16 %v740, %v736
    %v1009 = vpack.c.b16 %v741, %v737
    %v1010 = vpack.c.b16 %v742, %v738
    %v1011 = vpack.c.b16 %v743, %v739
    %v1012 = vpack.c.b16 %v748, %v744
    %v1013 = vpack.c.b16 %v749, %v745
    %v1014 = vpack.c.b16 %v750, %v746
    %v1015 = vpack.c.b16 %v751, %v747
    %v1016 = vpack.c.b16 %v756, %v752
    %v1017 = vpack.c.b16 %v757, %v753
    %v1018 = vpack.c.b16 %v758, %v754
    %v1019 = vpack.c.b16 %v759, %v755
    %v1020 = vpack.c.b16 %v764, %v760
    %v1021 = vpack.c.b16 %v765, %v761
    %v1022 = vpack.c.b16 %v766, %v762
    %v1023 = vpack.c.b16 %v767, %v763
    %v1024 = vpack.c.b16 %v772, %v768
    %v1025 = vpack.c.b16 %v773, %v769
    %v1026 = vpack.c.b16 %v774, %v770
    %v1027 = vpack.c.b16 %v775, %v771
    %v1028 = vpack.c.b16 %v780, %v776
    %v1029 = vpack.c.b16 %v781, %v777
    %v1030 = vpack.c.b16 %v782, %v778
    %v1031 = vpack.c.b16 %v783, %v779
    %v1032 = vpack.c.b16 %v788, %v784
    %v1033 = vpack.c.b16 %v789, %v785
    %v1034 = vpack.c.b16 %v790, %v786
    %v1035 = vpack.c.b16 %v791, %v787
    %v1036 = vpack.c.b16 %v796, %v792
    %v1037 = vpack.c.b16 %v797, %v793
    %v1038 = vpack.c.b16 %v798, %v794
    %v1039 = vpack.c.b16 %v799, %v795
    %v1040 = vpack.c.b16 %v804, %v800
    %v1041 = vpack.c.b16 %v805, %v801
    %v1042 = vpack.c.b16 %v806, %v802
    %v1043 = vpack.c.b16 %v807, %v803
    %v1044 = vpack.c.b16 %v812, %v808
    %v1045 = vpack.c.b16 %v813, %v809
    %v1046 = vpack.c.b16 %v814, %v810
    %v1047 = vpack.c.b16 %v815, %v811
    %v1048 = vpack.c.b16 %v820, %v816
    %v1049 = vpack.c.b16 %v821, %v817
    %v1050 = vpack.c.b16 %v822, %v818
    %v1051 = vpack.c.b16 %v823, %v819
    %v1052 = vpack.c.b16 %v828, %v824
    %v1053 = vpack.c.b16 %v829, %v825
    %v1054 = vpack.c.b16 %v830, %v826
    %v1055 = vpack.c.b16 %v831, %v827
    %v1056 = vpack.c.b16 %v836, %v832
    %v1057 = vpack.c.b16 %v837, %v833
    %v1058 = vpack.c.b16 %v838, %v834
    %v1059 = vpack.c.b16 %v839, %v835
    %v1060 = vpack.c.b16 %v844, %v840
    %v1061 = vpack.c.b16 %v845, %v841
    %v1062 = vpack.c.b16 %v846, %v842
    %v1063 = vpack.c.b16 %v847, %v843
    %v1064 = vpack.c.b16 %v852, %v848
    %v1065 = vpack.c.b16 %v853, %v849
    %v1066 = vpack.c.b16 %v854, %v850
    %v1067 = vpack.c.b16 %v855, %v851
    %v1068 = vpack.c.b16 %v860, %v856
    %v1069 = vpack.c.b16 %v861, %v857
    %v1070 = vpack.c.b16 %v862, %v858
    %v1071 = vpack.c.b16 %v863, %v859
    %v1072 = vpack.c.b16 %v868, %v864
    %v1073 = vpack.c.b16 %v869, %v865
    %v1074 = vpack.c.b16 %v870, %v866
    %v1075 = vpack.c.b16 %v871, %v867
    %v1076 = vpack.c.b16 %v876, %v872
    %v1077 = vpack.c.b16 %v877, %v873
    %v1078 = vpack.c.b16 %v878, %v874
    %v1079 = vpack.c.b16 %v879, %v875
    %v1080 = vpack.c.b16 %v884, %v880
    %v1081 = vpack.c.b16 %v885, %v881
    %v1082 = vpack.c.b16 %v886, %v882
    %v1083 = vpack.c.b16 %v887, %v883
    %vm1280 = vcmask 130048
    %v1282 = vsel %vm1280, %v81, 0
    %1284 = vmatprep.subr.bf16.mxu0 %v889
    %1285 = vmatpush1.bf16.msra.mxu0 %v888
    %1286 = vmatprep.subr.bf16.mxu0 %v893
    %1287 = vmatpush1.bf16.msra.mxu0 %v892
    %1288 = vmatprep.subr.bf16.mxu0 %v897
    %1289 = vmatpush1.bf16.msra.mxu0 %v896
    %1290 = vmatprep.subr.bf16.mxu0 %v901
    %1291 = vmatpush1.bf16.msra.mxu0 %v900
    %1292 = vmatprep.subr.bf16.mxu0 %v905
    %1293 = vmatpush1.bf16.msra.mxu0 %v904
    %1294 = vmatprep.subr.bf16.mxu0 %v909
    %1295 = vmatpush1.bf16.msra.mxu0 %v908
    %1296 = vmatprep.subr.bf16.mxu0 %v913
    %1297 = vmatpush1.bf16.msra.mxu0 %v912
    %1298 = vmatprep.subr.bf16.mxu0 %v917
    %1299 = vmatpush1.bf16.msra.mxu0 %v916
    %1300 = vmatprep.subr.bf16.mxu0 %v921
    %1301 = vmatpush1.bf16.msra.mxu0 %v920
    %1302 = vmatprep.subr.bf16.mxu0 %v925
    %1303 = vmatpush1.bf16.msra.mxu0 %v924
    %1304 = vmatprep.subr.bf16.mxu0 %v929
    %1305 = vmatpush1.bf16.msra.mxu0 %v928
    %1306 = vmatprep.subr.bf16.mxu0 %v933
    %1307 = vmatpush1.bf16.msra.mxu0 %v932
    %1308 = vmatprep.subr.bf16.mxu0 %v937
    %1309 = vmatpush1.bf16.msra.mxu0 %v936
    %1310 = vmatprep.subr.bf16.mxu0 %v941
    %1311 = vmatpush1.bf16.msra.mxu0 %v940
    %1312 = vmatprep.subr.bf16.mxu0 %v945
    %1313 = vmatpush1.bf16.msra.mxu0 %v944
    %1314 = vmatprep.subr.bf16.mxu0 %v949
    %1315 = vmatpush1.bf16.msra.mxu0 %v948
    %1316 = vmatprep.mubr.bf16.mxu0 %v76
    %1317 = vmatmul.mubr.bf16.gmra.mrb[0].mxu0 %v75
    %v1318 = vpop.f32.mrb[0].mxu0
    %v1319 = vadd.f32 %v283, %v1318
    %v1320 = vpop.f32.mrb[0].mxu0
    %v1321 = vadd.f32 %v287, %v1320
    %v1322 = vpop.f32.mrb[0].mxu0
    %v1323 = vpop.f32.mrb[0].mxu0
    %1324 = vdwg.mxu0
    %1325 = vmatprep.subr.bf16.mxu0 %v953
    %1326 = vmatpush1.bf16.msra.mxu0 %v952
    %1327 = vmatprep.subr.bf16.mxu0 %v957
    %1328 = vmatpush1.bf16.msra.mxu0 %v956
    %1329 = vmatprep.subr.bf16.mxu0 %v961
    %1330 = vmatpush1.bf16.msra.mxu0 %v960
    %1331 = vmatprep.subr.bf16.mxu0 %v965
    %1332 = vmatpush1.bf16.msra.mxu0 %v964
    %1333 = vmatprep.subr.bf16.mxu0 %v969
    %1334 = vmatpush1.bf16.msra.mxu0 %v968
    %1335 = vmatprep.subr.bf16.mxu0 %v973
    %1336 = vmatpush1.bf16.msra.mxu0 %v972
    %1337 = vmatprep.subr.bf16.mxu0 %v977
    %1338 = vmatpush1.bf16.msra.mxu0 %v976
    %1339 = vmatprep.subr.bf16.mxu0 %v981
    %1340 = vmatpush1.bf16.msra.mxu0 %v980
    %1341 = vmatprep.subr.bf16.mxu0 %v985
    %1342 = vmatpush1.bf16.msra.mxu0 %v984
    %1343 = vmatprep.subr.bf16.mxu0 %v989
    %1344 = vmatpush1.bf16.msra.mxu0 %v988
    %1345 = vmatprep.subr.bf16.mxu0 %v993
    %1346 = vmatpush1.bf16.msra.mxu0 %v992
    %1347 = vmatprep.subr.bf16.mxu0 %v997
    %1348 = vmatpush1.bf16.msra.mxu0 %v996
    %1349 = vmatprep.subr.bf16.mxu0 %v1001
    %1350 = vmatpush1.bf16.msra.mxu0 %v1000
    %1351 = vmatprep.subr.bf16.mxu0 %v1005
    %1352 = vmatpush1.bf16.msra.mxu0 %v1004
    %1353 = vmatprep.subr.bf16.mxu0 %v1009
    %1354 = vmatpush1.bf16.msra.mxu0 %v1008
    %1355 = vmatprep.subr.bf16.mxu0 %v1013
    %1356 = vmatpush1.bf16.msra.mxu0 %v1012
    %1357 = vmatprep.mubr.bf16.mxu0 %v78
    %1358 = vmatmul.mubr.bf16.gmra.mrb[0].mxu0 %v77
    %v1359 = vpop.f32.mrb[0].mxu0
    %v1360 = vadd.f32 %v1319, %v1359
    %v1361 = vpop.f32.mrb[0].mxu0
    %v1362 = vadd.f32 %v1321, %v1361
    %v1363 = vpop.f32.mrb[0].mxu0
    %v1364 = vpop.f32.mrb[0].mxu0
    %1365 = vdwg.mxu0
    %1366 = vmatprep.subr.bf16.mxu0 %v1017
    %1367 = vmatpush1.bf16.msra.mxu0 %v1016
    %1368 = vmatprep.subr.bf16.mxu0 %v1021
    %1369 = vmatpush1.bf16.msra.mxu0 %v1020
    %1370 = vmatprep.subr.bf16.mxu0 %v1025
    %1371 = vmatpush1.bf16.msra.mxu0 %v1024
    %1372 = vmatprep.subr.bf16.mxu0 %v1029
    %1373 = vmatpush1.bf16.msra.mxu0 %v1028
    %1374 = vmatprep.subr.bf16.mxu0 %v1033
    %1375 = vmatpush1.bf16.msra.mxu0 %v1032
    %1376 = vmatprep.subr.bf16.mxu0 %v1037
    %1377 = vmatpush1.bf16.msra.mxu0 %v1036
    %1378 = vmatprep.subr.bf16.mxu0 %v1041
    %1379 = vmatpush1.bf16.msra.mxu0 %v1040
    %1380 = vmatprep.subr.bf16.mxu0 %v1045
    %1381 = vmatpush1.bf16.msra.mxu0 %v1044
    %1382 = vmatprep.subr.bf16.mxu0 %v1049
    %1383 = vmatpush1.bf16.msra.mxu0 %v1048
    %1384 = vmatprep.subr.bf16.mxu0 %v1053
    %1385 = vmatpush1.bf16.msra.mxu0 %v1052
    %1386 = vmatprep.subr.bf16.mxu0 %v1057
    %1387 = vmatpush1.bf16.msra.mxu0 %v1056
    %1388 = vmatprep.subr.bf16.mxu0 %v1061
    %1389 = vmatpush1.bf16.msra.mxu0 %v1060
    %1390 = vmatprep.subr.bf16.mxu0 %v1065
    %1391 = vmatpush1.bf16.msra.mxu0 %v1064
    %1392 = vmatprep.subr.bf16.mxu0 %v1069
    %1393 = vmatpush1.bf16.msra.mxu0 %v1068
    %1394 = vmatprep.subr.bf16.mxu0 %v1073
    %1395 = vmatpush1.bf16.msra.mxu0 %v1072
    %1396 = vmatprep.subr.bf16.mxu0 %v1077
    %1397 = vmatpush1.bf16.msra.mxu0 %v1076
    %1398 = vmatprep.mubr.bf16.mxu0 %v80
    %1399 = vmatmul.mubr.bf16.gmra.mrb[0].mxu0 %v79
    %v1400 = vpop.f32.mrb[0].mxu0
    %v1401 = vadd.f32 %v1360, %v1400
    %v1402 = vpop.f32.mrb[0].mxu0
    %v1403 = vadd.f32 %v1362, %v1402
    %v1404 = vpop.f32.mrb[0].mxu0
    %v1405 = vpop.f32.mrb[0].mxu0
    %1406 = vdwg.mxu0
    %1407 = vmatprep.subr.bf16.mxu0 %v1081
    %1408 = vmatpush1.bf16.msra.mxu0 %v1080
    %1409 = vmatprep.subr.bf16.mxu0 0
    %1410 = vmatpush1.bf16.msra.mxu0 0
    %1411 = vmatprep.subr.bf16.mxu0 0
    %1412 = vmatpush1.bf16.msra.mxu0 0
    %1413 = vmatprep.subr.bf16.mxu0 0
    %1414 = vmatpush1.bf16.msra.mxu0 0
    %1415 = vmatprep.subr.bf16.mxu0 0
    %1416 = vmatpush1.bf16.msra.mxu0 0
    %1417 = vmatprep.subr.bf16.mxu0 0
    %1418 = vmatpush1.bf16.msra.mxu0 0
    %1419 = vmatprep.subr.bf16.mxu0 0
    %1420 = vmatpush1.bf16.msra.mxu0 0
    %1421 = vmatprep.subr.bf16.mxu0 0
    %1422 = vmatpush1.bf16.msra.mxu0 0
    %1423 = vmatprep.subr.bf16.mxu0 0
    %1424 = vmatpush1.bf16.msra.mxu0 0
    %1425 = vmatprep.subr.bf16.mxu0 0
    %1426 = vmatpush1.bf16.msra.mxu0 0
    %1427 = vmatprep.subr.bf16.mxu0 0
    %1428 = vmatpush1.bf16.msra.mxu0 0
    %1429 = vmatprep.subr.bf16.mxu0 0
    %1430 = vmatpush1.bf16.msra.mxu0 0
    %1431 = vmatprep.subr.bf16.mxu0 0
    %1432 = vmatpush1.bf16.msra.mxu0 0
    %1433 = vmatprep.subr.bf16.mxu0 0
    %1434 = vmatpush1.bf16.msra.mxu0 0
    %1435 = vmatprep.subr.bf16.mxu0 0
    %1436 = vmatpush1.bf16.msra.mxu0 0
    %1437 = vmatprep.subr.bf16.mxu0 0
    %1438 = vmatpush1.bf16.msra.mxu0 0
    %1439 = vmatprep.mubr.bf16.mxu0 0
    %1440 = vmatmul.mubr.bf16.gmra.mrb[0].mxu0 %v1282
    %v1441 = vpop.f32.mrb[0].mxu0
    %v1442 = vadd.f32 %v1401, %v1441
    %v1443 = vpop.f32.mrb[0].mxu0
    %v1444 = vadd.f32 %v1403, %v1443
    %v1445 = vpop.f32.mrb[0].mxu0
    %v1446 = vpop.f32.mrb[0].mxu0
    %1447 = vdwg.mxu0
    %1448 = vmatprep.subr.bf16.mxu0 %v891
    %1449 = vmatpush1.bf16.msra.mxu0 %v890
    %1450 = vmatprep.subr.bf16.mxu0 %v895
    %1451 = vmatpush1.bf16.msra.mxu0 %v894
    %1452 = vmatprep.subr.bf16.mxu0 %v899
    %1453 = vmatpush1.bf16.msra.mxu0 %v898
    %1454 = vmatprep.subr.bf16.mxu0 %v903
    %1455 = vmatpush1.bf16.msra.mxu0 %v902
    %1456 = vmatprep.subr.bf16.mxu0 %v907
    %1457 = vmatpush1.bf16.msra.mxu0 %v906
    %1458 = vmatprep.subr.bf16.mxu0 %v911
    %1459 = vmatpush1.bf16.msra.mxu0 %v910
    %1460 = vmatprep.subr.bf16.mxu0 %v915
    %1461 = vmatpush1.bf16.msra.mxu0 %v914
    %1462 = vmatprep.subr.bf16.mxu0 %v919
    %1463 = vmatpush1.bf16.msra.mxu0 %v918
    %1464 = vmatprep.subr.bf16.mxu0 %v923
    %1465 = vmatpush1.bf16.msra.mxu0 %v922
    %1466 = vmatprep.subr.bf16.mxu0 %v927
    %1467 = vmatpush1.bf16.msra.mxu0 %v926
    %1468 = vmatprep.subr.bf16.mxu0 %v931
    %1469 = vmatpush1.bf16.msra.mxu0 %v930
    %1470 = vmatprep.subr.bf16.mxu0 %v935
    %1471 = vmatpush1.bf16.msra.mxu0 %v934
    %1472 = vmatprep.subr.bf16.mxu0 %v939
    %1473 = vmatpush1.bf16.msra.mxu0 %v938
    %1474 = vmatprep.subr.bf16.mxu0 %v943
    %1475 = vmatpush1.bf16.msra.mxu0 %v942
    %1476 = vmatprep.subr.bf16.mxu0 %v947
    %1477 = vmatpush1.bf16.msra.mxu0 %v946
    %1478 = vmatprep.subr.bf16.mxu0 %v951
    %1479 = vmatpush1.bf16.msra.mxu0 %v950
    %1480 = vmatprep.mubr.bf16.mxu0 %v76
    %1481 = vmatmul.mubr.bf16.gmra.mrb[0].mxu0 %v75
    %v1482 = vpop.f32.mrb[0].mxu0
    %v1483 = vadd.f32 %v291, %v1482
    %v1484 = vpop.f32.mrb[0].mxu0
    %v1485 = vadd.f32 %v295, %v1484
    %v1486 = vpop.f32.mrb[0].mxu0
    %v1487 = vpop.f32.mrb[0].mxu0
    %1488 = vdwg.mxu0
    %1489 = vmatprep.subr.bf16.mxu0 %v955
    %1490 = vmatpush1.bf16.msra.mxu0 %v954
    %1491 = vmatprep.subr.bf16.mxu0 %v959
    %1492 = vmatpush1.bf16.msra.mxu0 %v958
    %1493 = vmatprep.subr.bf16.mxu0 %v963
    %1494 = vmatpush1.bf16.msra.mxu0 %v962
    %1495 = vmatprep.subr.bf16.mxu0 %v967
    %1496 = vmatpush1.bf16.msra.mxu0 %v966
    %1497 = vmatprep.subr.bf16.mxu0 %v971
    %1498 = vmatpush1.bf16.msra.mxu0 %v970
    %1499 = vmatprep.subr.bf16.mxu0 %v975
    %1500 = vmatpush1.bf16.msra.mxu0 %v974
    %1501 = vmatprep.subr.bf16.mxu0 %v979
    %1502 = vmatpush1.bf16.msra.mxu0 %v978
    %1503 = vmatprep.subr.bf16.mxu0 %v983
    %1504 = vmatpush1.bf16.msra.mxu0 %v982
    %1505 = vmatprep.subr.bf16.mxu0 %v987
    %1506 = vmatpush1.bf16.msra.mxu0 %v986
    %1507 = vmatprep.subr.bf16.mxu0 %v991
    %1508 = vmatpush1.bf16.msra.mxu0 %v990
    %1509 = vmatprep.subr.bf16.mxu0 %v995
    %1510 = vmatpush1.bf16.msra.mxu0 %v994
    %1511 = vmatprep.subr.bf16.mxu0 %v999
    %1512 = vmatpush1.bf16.msra.mxu0 %v998
    %1513 = vmatprep.subr.bf16.mxu0 %v1003
    %1514 = vmatpush1.bf16.msra.mxu0 %v1002
    %1515 = vmatprep.subr.bf16.mxu0 %v1007
    %1516 = vmatpush1.bf16.msra.mxu0 %v1006
    %1517 = vmatprep.subr.bf16.mxu0 %v1011
    %1518 = vmatpush1.bf16.msra.mxu0 %v1010
    %1519 = vmatprep.subr.bf16.mxu0 %v1015
    %1520 = vmatpush1.bf16.msra.mxu0 %v1014
    %1521 = vmatprep.mubr.bf16.mxu0 %v78
    %1522 = vmatmul.mubr.bf16.gmra.mrb[0].mxu0 %v77
    %v1523 = vpop.f32.mrb[0].mxu0
    %v1524 = vadd.f32 %v1483, %v1523
    %v1525 = vpop.f32.mrb[0].mxu0
    %v1526 = vadd.f32 %v1485, %v1525
    %v1527 = vpop.f32.mrb[0].mxu0
    %v1528 = vpop.f32.mrb[0].mxu0
    %1529 = vdwg.mxu0
    %1530 = vmatprep.subr.bf16.mxu0 %v1019
    %1531 = vmatpush1.bf16.msra.mxu0 %v1018
    %1532 = vmatprep.subr.bf16.mxu0 %v1023
    %1533 = vmatpush1.bf16.msra.mxu0 %v1022
    %1534 = vmatprep.subr.bf16.mxu0 %v1027
    %1535 = vmatpush1.bf16.msra.mxu0 %v1026
    %1536 = vmatprep.subr.bf16.mxu0 %v1031
    %1537 = vmatpush1.bf16.msra.mxu0 %v1030
    %1538 = vmatprep.subr.bf16.mxu0 %v1035
    %1539 = vmatpush1.bf16.msra.mxu0 %v1034
    %1540 = vmatprep.subr.bf16.mxu0 %v1039
    %1541 = vmatpush1.bf16.msra.mxu0 %v1038
    %1542 = vmatprep.subr.bf16.mxu0 %v1043
    %1543 = vmatpush1.bf16.msra.mxu0 %v1042
    %1544 = vmatprep.subr.bf16.mxu0 %v1047
    %1545 = vmatpush1.bf16.msra.mxu0 %v1046
    %1546 = vmatprep.subr.bf16.mxu0 %v1051
    %1547 = vmatpush1.bf16.msra.mxu0 %v1050
    %1548 = vmatprep.subr.bf16.mxu0 %v1055
    %1549 = vmatpush1.bf16.msra.mxu0 %v1054
    %1550 = vmatprep.subr.bf16.mxu0 %v1059
    %1551 = vmatpush1.bf16.msra.mxu0 %v1058
    %1552 = vmatprep.subr.bf16.mxu0 %v1063
    %1553 = vmatpush1.bf16.msra.mxu0 %v1062
    %1554 = vmatprep.subr.bf16.mxu0 %v1067
    %1555 = vmatpush1.bf16.msra.mxu0 %v1066
    %1556 = vmatprep.subr.bf16.mxu0 %v1071
    %1557 = vmatpush1.bf16.msra.mxu0 %v1070
    %1558 = vmatprep.subr.bf16.mxu0 %v1075
    %1559 = vmatpush1.bf16.msra.mxu0 %v1074
    %1560 = vmatprep.subr.bf16.mxu0 %v1079
    %1561 = vmatpush1.bf16.msra.mxu0 %v1078
    %1562 = vmatprep.mubr.bf16.mxu0 %v80
    %1563 = vmatmul.mubr.bf16.gmra.mrb[0].mxu0 %v79
    %v1564 = vpop.f32.mrb[0].mxu0
    %v1565 = vadd.f32 %v1524, %v1564
    %v1566 = vpop.f32.mrb[0].mxu0
    %v1567 = vadd.f32 %v1526, %v1566
    %v1568 = vpop.f32.mrb[0].mxu0
    %v1569 = vpop.f32.mrb[0].mxu0
    %1570 = vdwg.mxu0
    %1571 = vmatprep.subr.bf16.mxu0 %v1083
    %1572 = vmatpush1.bf16.msra.mxu0 %v1082
    %1573 = vmatprep.subr.bf16.mxu0 0
    %1574 = vmatpush1.bf16.msra.mxu0 0
    %1575 = vmatprep.subr.bf16.mxu0 0
    %1576 = vmatpush1.bf16.msra.mxu0 0
    %1577 = vmatprep.subr.bf16.mxu0 0
    %1578 = vmatpush1.bf16.msra.mxu0 0
    %1579 = vmatprep.subr.bf16.mxu0 0
    %1580 = vmatpush1.bf16.msra.mxu0 0
    %1581 = vmatprep.subr.bf16.mxu0 0
    %1582 = vmatpush1.bf16.msra.mxu0 0
    %1583 = vmatprep.subr.bf16.mxu0 0
    %1584 = vmatpush1.bf16.msra.mxu0 0
    %1585 = vmatprep.subr.bf16.mxu0 0
    %1586 = vmatpush1.bf16.msra.mxu0 0
    %1587 = vmatprep.subr.bf16.mxu0 0
    %1588 = vmatpush1.bf16.msra.mxu0 0
    %1589 = vmatprep.subr.bf16.mxu0 0
    %1590 = vmatpush1.bf16.msra.mxu0 0
    %1591 = vmatprep.subr.bf16.mxu0 0
    %1592 = vmatpush1.bf16.msra.mxu0 0
    %1593 = vmatprep.subr.bf16.mxu0 0
    %1594 = vmatpush1.bf16.msra.mxu0 0
    %1595 = vmatprep.subr.bf16.mxu0 0
    %1596 = vmatpush1.bf16.msra.mxu0 0
    %1597 = vmatprep.subr.bf16.mxu0 0
    %1598 = vmatpush1.bf16.msra.mxu0 0
    %1599 = vmatprep.subr.bf16.mxu0 0
    %1600 = vmatpush1.bf16.msra.mxu0 0
    %1601 = vmatprep.subr.bf16.mxu0 0
    %1602 = vmatpush1.bf16.msra.mxu0 0
    %1603 = vmatprep.mubr.bf16.mxu0 0
    %1604 = vmatmul.mubr.bf16.gmra.mrb[0].mxu0 %v1282
    %v1605 = vpop.f32.mrb[0].mxu0
    %v1606 = vadd.f32 %v1565, %v1605
    %v1607 = vpop.f32.mrb[0].mxu0
    %v1608 = vadd.f32 %v1567, %v1607
    %v1609 = vpop.f32.mrb[0].mxu0
    %v1610 = vpop.f32.mrb[0].mxu0
    %1611 = vdwg.mxu0
    %v1612 = vmax.f32 %v1442, 0.0
    %v1613 = vmax.f32 %v1444, 0.0
    %v1614 = vmax.f32 %v1606, 0.0
    %v1615 = vmax.f32 %v1608, 0.0
    %v1616 = vpack.c.bf16 %v1612, %v1612
    %v1617 = vpack.c.bf16 %v1613, %v1613
    %v1618 = vpack.c.bf16 %v1614, %v1614
    %v1619 = vpack.c.bf16 %v1615, %v1615
    %v1620 = vld [vmem:[#allocation4] sm:$0xff]
    %v1621 = vld [vmem:[#allocation4 + $0x8] sm:$0xff]
    %v1622 = vld [vmem:[#allocation4 + $0x10] sm:$0xff]
    %v1623 = vld [vmem:[#allocation4 + $0x18] sm:$0xff]
    %v1624 = vld [vmem:[#allocation4 + $0x20] sm:$0xff]
    %v1625 = vld [vmem:[#allocation4 + $0x28] sm:$0xff]
    %v1626 = vld [vmem:[#allocation4 + $0x30] sm:$0xff]
    %v1627 = vld [vmem:[#allocation4 + $0x38] sm:$0xff]
    %v1628 = vld [vmem:[#allocation4 + $0x40] sm:$0xff]
    %v1629 = vld [vmem:[#allocation4 + $0x48] sm:$0xff]
    %v1630 = vld [vmem:[#allocation4 + $0x50] sm:$0xff]
    %v1631 = vld [vmem:[#allocation4 + $0x58] sm:$0xff]
    %v1632 = vld [vmem:[#allocation4 + $0x60] sm:$0xff]
    %v1633 = vld [vmem:[#allocation4 + $0x68] sm:$0xff]
    %v1634 = vld [vmem:[#allocation4 + $0x70] sm:$0xff]
    %v1635 = vld [vmem:[#allocation4 + $0x78] sm:$0xff]
    %v1636 = vld [vmem:[#allocation4 + $0x80] sm:$0xff]
    %v1637 = vld [vmem:[#allocation4 + $0x88] sm:$0xff]
    %v1638 = vld [vmem:[#allocation4 + $0x90] sm:$0xff]
    %v1639 = vld [vmem:[#allocation4 + $0x98] sm:$0xff]
    %v1640 = vld [vmem:[#allocation4 + $0xa0] sm:$0xff]
    %v1641 = vld [vmem:[#allocation4 + $0xa8] sm:$0xff]
    %v1642 = vld [vmem:[#allocation4 + $0xb0] sm:$0xff]
    %v1643 = vld [vmem:[#allocation4 + $0xb8] sm:$0xff]
    %v1644 = vld [vmem:[#allocation4 + $0xc0] sm:$0xff]
    %v1645 = vld [vmem:[#allocation4 + $0xc8] sm:$0xff]
    %v1646 = vld [vmem:[#allocation4 + $0xd0] sm:$0xff]
    %v1647 = vld [vmem:[#allocation4 + $0xd8] sm:$0xff]
    %v1648 = vld [vmem:[#allocation4 + $0xe0] sm:$0xff]
    %v1649 = vld [vmem:[#allocation4 + $0xe8] sm:$0xff]
    %v1650 = vld [vmem:[#allocation4 + $0xf0] sm:$0xff]
    %v1651 = vld [vmem:[#allocation4 + $0xf8] sm:$0xff]
    %v1652 = vld [vmem:[#allocation4 + $0x100] sm:$0xff]
    %v1653 = vld [vmem:[#allocation4 + $0x108] sm:$0xff]
    %v1654 = vld [vmem:[#allocation4 + $0x110] sm:$0xff]
    %v1655 = vld [vmem:[#allocation4 + $0x118] sm:$0xff]
    %v1656 = vld [vmem:[#allocation4 + $0x120] sm:$0xff]
    %v1657 = vld [vmem:[#allocation4 + $0x128] sm:$0xff]
    %v1658 = vld [vmem:[#allocation4 + $0x130] sm:$0xff]
    %v1659 = vld [vmem:[#allocation4 + $0x138] sm:$0xff]
    %v1660 = vld [vmem:[#allocation4 + $0x140] sm:$0xff]
    %v1661 = vld [vmem:[#allocation4 + $0x148] sm:$0xff]
    %v1662 = vld [vmem:[#allocation4 + $0x150] sm:$0xff]
    %v1663 = vld [vmem:[#allocation4 + $0x158] sm:$0xff]
    %v1664 = vld [vmem:[#allocation4 + $0x160] sm:$0xff]
    %v1665 = vld [vmem:[#allocation4 + $0x168] sm:$0xff]
    %v1666 = vld [vmem:[#allocation4 + $0x170] sm:$0xff]
    %v1667 = vld [vmem:[#allocation4 + $0x178] sm:$0xff]
    %v1668 = vld [vmem:[#allocation4 + $0x180] sm:$0xff]
    %v1669 = vld [vmem:[#allocation4 + $0x188] sm:$0xff]
    %v1670 = vld [vmem:[#allocation4 + $0x190] sm:$0xff]
    %v1671 = vld [vmem:[#allocation4 + $0x198] sm:$0xff]
    %v1672 = vld [vmem:[#allocation4 + $0x1a0] sm:$0xff]
    %v1673 = vld [vmem:[#allocation4 + $0x1a8] sm:$0xff]
    %v1674 = vld [vmem:[#allocation4 + $0x1b0] sm:$0xff]
    %v1675 = vld [vmem:[#allocation4 + $0x1b8] sm:$0xff]
    %v1676 = vld [vmem:[#allocation4 + $0x1c0] sm:$0xff]
    %v1677 = vld [vmem:[#allocation4 + $0x1c8] sm:$0xff]
    %v1678 = vld [vmem:[#allocation4 + $0x1d0] sm:$0xff]
    %v1679 = vld [vmem:[#allocation4 + $0x1d8] sm:$0xff]
    %v1680 = vld [vmem:[#allocation4 + $0x1e0] sm:$0xff]
    %v1681 = vld [vmem:[#allocation4 + $0x1e8] sm:$0xff]
    %v1682 = vld [vmem:[#allocation4 + $0x1f0] sm:$0xff]
    %v1683 = vld [vmem:[#allocation4 + $0x1f8] sm:$0xff]
    %v1684 = vld [vmem:[#allocation4 + $0x200] sm:$0xff]
    %v1685 = vld [vmem:[#allocation4 + $0x208] sm:$0xff]
    %v1686 = vld [vmem:[#allocation4 + $0x210] sm:$0xff]
    %v1687 = vld [vmem:[#allocation4 + $0x218] sm:$0xff]
    %v1688 = vld [vmem:[#allocation4 + $0x220] sm:$0xff]
    %v1689 = vld [vmem:[#allocation4 + $0x228] sm:$0xff]
    %v1690 = vld [vmem:[#allocation4 + $0x230] sm:$0xff]
    %v1691 = vld [vmem:[#allocation4 + $0x238] sm:$0xff]
    %v1692 = vld [vmem:[#allocation4 + $0x240] sm:$0xff]
    %v1693 = vld [vmem:[#allocation4 + $0x248] sm:$0xff]
    %v1694 = vld [vmem:[#allocation4 + $0x250] sm:$0xff]
    %v1695 = vld [vmem:[#allocation4 + $0x258] sm:$0xff]
    %v1696 = vld [vmem:[#allocation4 + $0x260] sm:$0xff]
    %v1697 = vld [vmem:[#allocation4 + $0x268] sm:$0xff]
    %v1698 = vld [vmem:[#allocation4 + $0x270] sm:$0xff]
    %v1699 = vld [vmem:[#allocation4 + $0x278] sm:$0xff]
    %v1700 = vld [vmem:[#allocation4 + $0x280] sm:$0xff]
    %v1701 = vld [vmem:[#allocation4 + $0x288] sm:$0xff]
    %v1702 = vld [vmem:[#allocation4 + $0x290] sm:$0xff]
    %v1703 = vld [vmem:[#allocation4 + $0x298] sm:$0xff]
    %v1704 = vld [vmem:[#allocation4 + $0x2a0] sm:$0xff]
    %v1705 = vld [vmem:[#allocation4 + $0x2a8] sm:$0xff]
    %v1706 = vld [vmem:[#allocation4 + $0x2b0] sm:$0xff]
    %v1707 = vld [vmem:[#allocation4 + $0x2b8] sm:$0xff]
    %v1708 = vld [vmem:[#allocation4 + $0x2c0] sm:$0xff]
    %v1709 = vld [vmem:[#allocation4 + $0x2c8] sm:$0xff]
    %v1710 = vld [vmem:[#allocation4 + $0x2d0] sm:$0xff]
    %v1711 = vld [vmem:[#allocation4 + $0x2d8] sm:$0xff]
    %v1712 = vld [vmem:[#allocation4 + $0x2e0] sm:$0xff]
    %v1713 = vld [vmem:[#allocation4 + $0x2e8] sm:$0xff]
    %v1714 = vld [vmem:[#allocation4 + $0x2f0] sm:$0xff]
    %v1715 = vld [vmem:[#allocation4 + $0x2f8] sm:$0xff]
    %v1716 = vld [vmem:[#allocation4 + $0x300] sm:$0xff]
    %v1717 = vld [vmem:[#allocation4 + $0x308] sm:$0xff]
    %v1718 = vld [vmem:[#allocation4 + $0x310] sm:$0xff]
    %v1719 = vld [vmem:[#allocation4 + $0x318] sm:$0xff]
    %v1720 = vld [vmem:[#allocation4 + $0x320] sm:$0xff]
    %v1721 = vld [vmem:[#allocation4 + $0x328] sm:$0xff]
    %v1722 = vld [vmem:[#allocation4 + $0x330] sm:$0xff]
    %v1723 = vld [vmem:[#allocation4 + $0x338] sm:$0xff]
    %v1724 = vld [vmem:[#allocation4 + $0x340] sm:$0xff]
    %v1725 = vld [vmem:[#allocation4 + $0x348] sm:$0xff]
    %v1726 = vld [vmem:[#allocation4 + $0x350] sm:$0xff]
    %v1727 = vld [vmem:[#allocation4 + $0x358] sm:$0xff]
    %v1728 = vld [vmem:[#allocation4 + $0x360] sm:$0xff]
    %v1729 = vld [vmem:[#allocation4 + $0x368] sm:$0xff]
    %v1730 = vld [vmem:[#allocation4 + $0x370] sm:$0xff]
    %v1731 = vld [vmem:[#allocation4 + $0x378] sm:$0xff]
    %v1732 = vld [vmem:[#allocation4 + $0x380] sm:$0xff]
    %v1733 = vld [vmem:[#allocation4 + $0x388] sm:$0xff]
    %v1734 = vld [vmem:[#allocation4 + $0x390] sm:$0xff]
    %v1735 = vld [vmem:[#allocation4 + $0x398] sm:$0xff]
    %v1736 = vld [vmem:[#allocation4 + $0x3a0] sm:$0xff]
    %v1737 = vld [vmem:[#allocation4 + $0x3a8] sm:$0xff]
    %v1738 = vld [vmem:[#allocation4 + $0x3b0] sm:$0xff]
    %v1739 = vld [vmem:[#allocation4 + $0x3b8] sm:$0xff]
    %v1740 = vld [vmem:[#allocation4 + $0x3c0] sm:$0xff]
    %v1741 = vld [vmem:[#allocation4 + $0x3c8] sm:$0xff]
    %v1742 = vld [vmem:[#allocation4 + $0x3d0] sm:$0xff]
    %v1743 = vld [vmem:[#allocation4 + $0x3d8] sm:$0xff]
    %v1744 = vld [vmem:[#allocation4 + $0x3e0] sm:$0xff]
    %v1745 = vld [vmem:[#allocation4 + $0x3e8] sm:$0xff]
    %v1746 = vld [vmem:[#allocation4 + $0x3f0] sm:$0xff]
    %v1747 = vld [vmem:[#allocation4 + $0x3f8] sm:$0xff]
    %v1748 = vld [vmem:[%s4] sm:$0xf]
    %v1750 = vlaneseq
    %v1751 = vshrl.u32 %v1750, 7
    %v1752 = vsub.s32 0, %v1751
    %v1753 = vrot.slane %v1748, %v1752
    %v1754 = vlaneseq
    %v1755 = vshrl.u32 %v1754, 7
    %v1756 = vsub.s32 1, %v1755
    %v1757 = vrot.slane %v1748, %v1756
    %v1758 = vlaneseq
    %v1759 = vshrl.u32 %v1758, 7
    %v1760 = vsub.s32 2, %v1759
    %v1761 = vrot.slane %v1748, %v1760
    %v1762 = vlaneseq
    %v1763 = vshrl.u32 %v1762, 7
    %v1764 = vsub.s32 3, %v1763
    %v1765 = vrot.slane %v1748, %v1764
    %v1898 = vunpack.c.l.b16 %v1620
    %v1899 = vunpack.c.h.b16 %v1620
    %v1900 = vunpack.c.l.b16 %v1621
    %v1901 = vunpack.c.h.b16 %v1621
    %v1902 = vunpack.c.l.b16 %v1622
    %v1903 = vunpack.c.h.b16 %v1622
    %v1904 = vunpack.c.l.b16 %v1623
    %v1905 = vunpack.c.h.b16 %v1623
    %v1906 = vunpack.c.l.b16 %v1624
    %v1907 = vunpack.c.h.b16 %v1624
    %v1908 = vunpack.c.l.b16 %v1625
    %v1909 = vunpack.c.h.b16 %v1625
    %v1910 = vunpack.c.l.b16 %v1626
    %v1911 = vunpack.c.h.b16 %v1626
    %v1912 = vunpack.c.l.b16 %v1627
    %v1913 = vunpack.c.h.b16 %v1627
    %v1914 = vunpack.c.l.b16 %v1628
    %v1915 = vunpack.c.h.b16 %v1628
    %v1916 = vunpack.c.l.b16 %v1629
    %v1917 = vunpack.c.h.b16 %v1629
    %v1918 = vunpack.c.l.b16 %v1630
    %v1919 = vunpack.c.h.b16 %v1630
    %v1920 = vunpack.c.l.b16 %v1631
    %v1921 = vunpack.c.h.b16 %v1631
    %v1922 = vunpack.c.l.b16 %v1632
    %v1923 = vunpack.c.h.b16 %v1632
    %v1924 = vunpack.c.l.b16 %v1633
    %v1925 = vunpack.c.h.b16 %v1633
    %v1926 = vunpack.c.l.b16 %v1634
    %v1927 = vunpack.c.h.b16 %v1634
    %v1928 = vunpack.c.l.b16 %v1635
    %v1929 = vunpack.c.h.b16 %v1635
    %v1930 = vunpack.c.l.b16 %v1636
    %v1931 = vunpack.c.h.b16 %v1636
    %v1932 = vunpack.c.l.b16 %v1637
    %v1933 = vunpack.c.h.b16 %v1637
    %v1934 = vunpack.c.l.b16 %v1638
    %v1935 = vunpack.c.h.b16 %v1638
    %v1936 = vunpack.c.l.b16 %v1639
    %v1937 = vunpack.c.h.b16 %v1639
    %v1938 = vunpack.c.l.b16 %v1640
    %v1939 = vunpack.c.h.b16 %v1640
    %v1940 = vunpack.c.l.b16 %v1641
    %v1941 = vunpack.c.h.b16 %v1641
    %v1942 = vunpack.c.l.b16 %v1642
    %v1943 = vunpack.c.h.b16 %v1642
    %v1944 = vunpack.c.l.b16 %v1643
    %v1945 = vunpack.c.h.b16 %v1643
    %v1946 = vunpack.c.l.b16 %v1644
    %v1947 = vunpack.c.h.b16 %v1644
    %v1948 = vunpack.c.l.b16 %v1645
    %v1949 = vunpack.c.h.b16 %v1645
    %v1950 = vunpack.c.l.b16 %v1646
    %v1951 = vunpack.c.h.b16 %v1646
    %v1952 = vunpack.c.l.b16 %v1647
    %v1953 = vunpack.c.h.b16 %v1647
    %v1954 = vunpack.c.l.b16 %v1648
    %v1955 = vunpack.c.h.b16 %v1648
    %v1956 = vunpack.c.l.b16 %v1649
    %v1957 = vunpack.c.h.b16 %v1649
    %v1958 = vunpack.c.l.b16 %v1650
    %v1959 = vunpack.c.h.b16 %v1650
    %v1960 = vunpack.c.l.b16 %v1651
    %v1961 = vunpack.c.h.b16 %v1651
    %v1962 = vunpack.c.l.b16 %v1652
    %v1963 = vunpack.c.h.b16 %v1652
    %v1964 = vunpack.c.l.b16 %v1653
    %v1965 = vunpack.c.h.b16 %v1653
    %v1966 = vunpack.c.l.b16 %v1654
    %v1967 = vunpack.c.h.b16 %v1654
    %v1968 = vunpack.c.l.b16 %v1655
    %v1969 = vunpack.c.h.b16 %v1655
    %v1970 = vunpack.c.l.b16 %v1656
    %v1971 = vunpack.c.h.b16 %v1656
    %v1972 = vunpack.c.l.b16 %v1657
    %v1973 = vunpack.c.h.b16 %v1657
    %v1974 = vunpack.c.l.b16 %v1658
    %v1975 = vunpack.c.h.b16 %v1658
    %v1976 = vunpack.c.l.b16 %v1659
    %v1977 = vunpack.c.h.b16 %v1659
    %v1978 = vunpack.c.l.b16 %v1660
    %v1979 = vunpack.c.h.b16 %v1660
    %v1980 = vunpack.c.l.b16 %v1661
    %v1981 = vunpack.c.h.b16 %v1661
    %v1982 = vunpack.c.l.b16 %v1662
    %v1983 = vunpack.c.h.b16 %v1662
    %v1984 = vunpack.c.l.b16 %v1663
    %v1985 = vunpack.c.h.b16 %v1663
    %v1986 = vunpack.c.l.b16 %v1664
    %v1987 = vunpack.c.h.b16 %v1664
    %v1988 = vunpack.c.l.b16 %v1665
    %v1989 = vunpack.c.h.b16 %v1665
    %v1990 = vunpack.c.l.b16 %v1666
    %v1991 = vunpack.c.h.b16 %v1666
    %v1992 = vunpack.c.l.b16 %v1667
    %v1993 = vunpack.c.h.b16 %v1667
    %v1994 = vunpack.c.l.b16 %v1668
    %v1995 = vunpack.c.h.b16 %v1668
    %v1996 = vunpack.c.l.b16 %v1669
    %v1997 = vunpack.c.h.b16 %v1669
    %v1998 = vunpack.c.l.b16 %v1670
    %v1999 = vunpack.c.h.b16 %v1670
    %v2000 = vunpack.c.l.b16 %v1671
    %v2001 = vunpack.c.h.b16 %v1671
    %v2002 = vunpack.c.l.b16 %v1672
    %v2003 = vunpack.c.h.b16 %v1672
    %v2004 = vunpack.c.l.b16 %v1673
    %v2005 = vunpack.c.h.b16 %v1673
    %v2006 = vunpack.c.l.b16 %v1674
    %v2007 = vunpack.c.h.b16 %v1674
    %v2008 = vunpack.c.l.b16 %v1675
    %v2009 = vunpack.c.h.b16 %v1675
    %v2010 = vunpack.c.l.b16 %v1676
    %v2011 = vunpack.c.h.b16 %v1676
    %v2012 = vunpack.c.l.b16 %v1677
    %v2013 = vunpack.c.h.b16 %v1677
    %v2014 = vunpack.c.l.b16 %v1678
    %v2015 = vunpack.c.h.b16 %v1678
    %v2016 = vunpack.c.l.b16 %v1679
    %v2017 = vunpack.c.h.b16 %v1679
    %v2018 = vunpack.c.l.b16 %v1680
    %v2019 = vunpack.c.h.b16 %v1680
    %v2020 = vunpack.c.l.b16 %v1681
    %v2021 = vunpack.c.h.b16 %v1681
    %v2022 = vunpack.c.l.b16 %v1682
    %v2023 = vunpack.c.h.b16 %v1682
    %v2024 = vunpack.c.l.b16 %v1683
    %v2025 = vunpack.c.h.b16 %v1683
    %v2026 = vunpack.c.l.b16 %v1684
    %v2027 = vunpack.c.h.b16 %v1684
    %v2028 = vunpack.c.l.b16 %v1685
    %v2029 = vunpack.c.h.b16 %v1685
    %v2030 = vunpack.c.l.b16 %v1686
    %v2031 = vunpack.c.h.b16 %v1686
    %v2032 = vunpack.c.l.b16 %v1687
    %v2033 = vunpack.c.h.b16 %v1687
    %v2034 = vunpack.c.l.b16 %v1688
    %v2035 = vunpack.c.h.b16 %v1688
    %v2036 = vunpack.c.l.b16 %v1689
    %v2037 = vunpack.c.h.b16 %v1689
    %v2038 = vunpack.c.l.b16 %v1690
    %v2039 = vunpack.c.h.b16 %v1690
    %v2040 = vunpack.c.l.b16 %v1691
    %v2041 = vunpack.c.h.b16 %v1691
    %v2042 = vunpack.c.l.b16 %v1692
    %v2043 = vunpack.c.h.b16 %v1692
    %v2044 = vunpack.c.l.b16 %v1693
    %v2045 = vunpack.c.h.b16 %v1693
    %v2046 = vunpack.c.l.b16 %v1694
    %v2047 = vunpack.c.h.b16 %v1694
    %v2048 = vunpack.c.l.b16 %v1695
    %v2049 = vunpack.c.h.b16 %v1695
    %v2050 = vunpack.c.l.b16 %v1696
    %v2051 = vunpack.c.h.b16 %v1696
    %v2052 = vunpack.c.l.b16 %v1697
    %v2053 = vunpack.c.h.b16 %v1697
    %v2054 = vunpack.c.l.b16 %v1698
    %v2055 = vunpack.c.h.b16 %v1698
    %v2056 = vunpack.c.l.b16 %v1699
    %v2057 = vunpack.c.h.b16 %v1699
    %v2058 = vunpack.c.l.b16 %v1700
    %v2059 = vunpack.c.h.b16 %v1700
    %v2060 = vunpack.c.l.b16 %v1701
    %v2061 = vunpack.c.h.b16 %v1701
    %v2062 = vunpack.c.l.b16 %v1702
    %v2063 = vunpack.c.h.b16 %v1702
    %v2064 = vunpack.c.l.b16 %v1703
    %v2065 = vunpack.c.h.b16 %v1703
    %v2066 = vunpack.c.l.b16 %v1704
    %v2067 = vunpack.c.h.b16 %v1704
    %v2068 = vunpack.c.l.b16 %v1705
    %v2069 = vunpack.c.h.b16 %v1705
    %v2070 = vunpack.c.l.b16 %v1706
    %v2071 = vunpack.c.h.b16 %v1706
    %v2072 = vunpack.c.l.b16 %v1707
    %v2073 = vunpack.c.h.b16 %v1707
    %v2074 = vunpack.c.l.b16 %v1708
    %v2075 = vunpack.c.h.b16 %v1708
    %v2076 = vunpack.c.l.b16 %v1709
    %v2077 = vunpack.c.h.b16 %v1709
    %v2078 = vunpack.c.l.b16 %v1710
    %v2079 = vunpack.c.h.b16 %v1710
    %v2080 = vunpack.c.l.b16 %v1711
    %v2081 = vunpack.c.h.b16 %v1711
    %v2082 = vunpack.c.l.b16 %v1712
    %v2083 = vunpack.c.h.b16 %v1712
    %v2084 = vunpack.c.l.b16 %v1713
    %v2085 = vunpack.c.h.b16 %v1713
    %v2086 = vunpack.c.l.b16 %v1714
    %v2087 = vunpack.c.h.b16 %v1714
    %v2088 = vunpack.c.l.b16 %v1715
    %v2089 = vunpack.c.h.b16 %v1715
    %v2090 = vunpack.c.l.b16 %v1716
    %v2091 = vunpack.c.h.b16 %v1716
    %v2092 = vunpack.c.l.b16 %v1717
    %v2093 = vunpack.c.h.b16 %v1717
    %v2094 = vunpack.c.l.b16 %v1718
    %v2095 = vunpack.c.h.b16 %v1718
    %v2096 = vunpack.c.l.b16 %v1719
    %v2097 = vunpack.c.h.b16 %v1719
    %v2098 = vunpack.c.l.b16 %v1720
    %v2099 = vunpack.c.h.b16 %v1720
    %v2100 = vunpack.c.l.b16 %v1721
    %v2101 = vunpack.c.h.b16 %v1721
    %v2102 = vunpack.c.l.b16 %v1722
    %v2103 = vunpack.c.h.b16 %v1722
    %v2104 = vunpack.c.l.b16 %v1723
    %v2105 = vunpack.c.h.b16 %v1723
    %v2106 = vunpack.c.l.b16 %v1724
    %v2107 = vunpack.c.h.b16 %v1724
    %v2108 = vunpack.c.l.b16 %v1725
    %v2109 = vunpack.c.h.b16 %v1725
    %v2110 = vunpack.c.l.b16 %v1726
    %v2111 = vunpack.c.h.b16 %v1726
    %v2112 = vunpack.c.l.b16 %v1727
    %v2113 = vunpack.c.h.b16 %v1727
    %v2114 = vunpack.c.l.b16 %v1728
    %v2115 = vunpack.c.h.b16 %v1728
    %v2116 = vunpack.c.l.b16 %v1729
    %v2117 = vunpack.c.h.b16 %v1729
    %v2118 = vunpack.c.l.b16 %v1730
    %v2119 = vunpack.c.h.b16 %v1730
    %v2120 = vunpack.c.l.b16 %v1731
    %v2121 = vunpack.c.h.b16 %v1731
    %v2122 = vunpack.c.l.b16 %v1732
    %v2123 = vunpack.c.h.b16 %v1732
    %v2124 = vunpack.c.l.b16 %v1733
    %v2125 = vunpack.c.h.b16 %v1733
    %v2126 = vunpack.c.l.b16 %v1734
    %v2127 = vunpack.c.h.b16 %v1734
    %v2128 = vunpack.c.l.b16 %v1735
    %v2129 = vunpack.c.h.b16 %v1735
    %v2130 = vunpack.c.l.b16 %v1736
    %v2131 = vunpack.c.h.b16 %v1736
    %v2132 = vunpack.c.l.b16 %v1737
    %v2133 = vunpack.c.h.b16 %v1737
    %v2134 = vunpack.c.l.b16 %v1738
    %v2135 = vunpack.c.h.b16 %v1738
    %v2136 = vunpack.c.l.b16 %v1739
    %v2137 = vunpack.c.h.b16 %v1739
    %v2138 = vunpack.c.l.b16 %v1740
    %v2139 = vunpack.c.h.b16 %v1740
    %v2140 = vunpack.c.l.b16 %v1741
    %v2141 = vunpack.c.h.b16 %v1741
    %v2142 = vunpack.c.l.b16 %v1742
    %v2143 = vunpack.c.h.b16 %v1742
    %v2144 = vunpack.c.l.b16 %v1743
    %v2145 = vunpack.c.h.b16 %v1743
    %v2146 = vunpack.c.l.b16 %v1744
    %v2147 = vunpack.c.h.b16 %v1744
    %v2148 = vunpack.c.l.b16 %v1745
    %v2149 = vunpack.c.h.b16 %v1745
    %v2150 = vunpack.c.l.b16 %v1746
    %v2151 = vunpack.c.h.b16 %v1746
    %v2152 = vunpack.c.l.b16 %v1747
    %v2153 = vunpack.c.h.b16 %v1747
    %v2154 = vpack.c.b16 %v1902, %v1898
    %v2155 = vpack.c.b16 %v1903, %v1899
    %v2156 = vpack.c.b16 %v1904, %v1900
    %v2157 = vpack.c.b16 %v1905, %v1901
    %v2158 = vpack.c.b16 %v1910, %v1906
    %v2159 = vpack.c.b16 %v1911, %v1907
    %v2160 = vpack.c.b16 %v1912, %v1908
    %v2161 = vpack.c.b16 %v1913, %v1909
    %v2162 = vpack.c.b16 %v1918, %v1914
    %v2163 = vpack.c.b16 %v1919, %v1915
    %v2164 = vpack.c.b16 %v1920, %v1916
    %v2165 = vpack.c.b16 %v1921, %v1917
    %v2166 = vpack.c.b16 %v1926, %v1922
    %v2167 = vpack.c.b16 %v1927, %v1923
    %v2168 = vpack.c.b16 %v1928, %v1924
    %v2169 = vpack.c.b16 %v1929, %v1925
    %v2170 = vpack.c.b16 %v1934, %v1930
    %v2171 = vpack.c.b16 %v1935, %v1931
    %v2172 = vpack.c.b16 %v1936, %v1932
    %v2173 = vpack.c.b16 %v1937, %v1933
    %v2174 = vpack.c.b16 %v1942, %v1938
    %v2175 = vpack.c.b16 %v1943, %v1939
    %v2176 = vpack.c.b16 %v1944, %v1940
    %v2177 = vpack.c.b16 %v1945, %v1941
    %v2178 = vpack.c.b16 %v1950, %v1946
    %v2179 = vpack.c.b16 %v1951, %v1947
    %v2180 = vpack.c.b16 %v1952, %v1948
    %v2181 = vpack.c.b16 %v1953, %v1949
    %v2182 = vpack.c.b16 %v1958, %v1954
    %v2183 = vpack.c.b16 %v1959, %v1955
    %v2184 = vpack.c.b16 %v1960, %v1956
    %v2185 = vpack.c.b16 %v1961, %v1957
    %v2186 = vpack.c.b16 %v1966, %v1962
    %v2187 = vpack.c.b16 %v1967, %v1963
    %v2188 = vpack.c.b16 %v1968, %v1964
    %v2189 = vpack.c.b16 %v1969, %v1965
    %v2190 = vpack.c.b16 %v1974, %v1970
    %v2191 = vpack.c.b16 %v1975, %v1971
    %v2192 = vpack.c.b16 %v1976, %v1972
    %v2193 = vpack.c.b16 %v1977, %v1973
    %v2194 = vpack.c.b16 %v1982, %v1978
    %v2195 = vpack.c.b16 %v1983, %v1979
    %v2196 = vpack.c.b16 %v1984, %v1980
    %v2197 = vpack.c.b16 %v1985, %v1981
    %v2198 = vpack.c.b16 %v1990, %v1986
    %v2199 = vpack.c.b16 %v1991, %v1987
    %v2200 = vpack.c.b16 %v1992, %v1988
    %v2201 = vpack.c.b16 %v1993, %v1989
    %v2202 = vpack.c.b16 %v1998, %v1994
    %v2203 = vpack.c.b16 %v1999, %v1995
    %v2204 = vpack.c.b16 %v2000, %v1996
    %v2205 = vpack.c.b16 %v2001, %v1997
    %v2206 = vpack.c.b16 %v2006, %v2002
    %v2207 = vpack.c.b16 %v2007, %v2003
    %v2208 = vpack.c.b16 %v2008, %v2004
    %v2209 = vpack.c.b16 %v2009, %v2005
    %v2210 = vpack.c.b16 %v2014, %v2010
    %v2211 = vpack.c.b16 %v2015, %v2011
    %v2212 = vpack.c.b16 %v2016, %v2012
    %v2213 = vpack.c.b16 %v2017, %v2013
    %v2214 = vpack.c.b16 %v2022, %v2018
    %v2215 = vpack.c.b16 %v2023, %v2019
    %v2216 = vpack.c.b16 %v2024, %v2020
    %v2217 = vpack.c.b16 %v2025, %v2021
    %v2218 = vpack.c.b16 %v2030, %v2026
    %v2219 = vpack.c.b16 %v2031, %v2027
    %v2220 = vpack.c.b16 %v2032, %v2028
    %v2221 = vpack.c.b16 %v2033, %v2029
    %v2222 = vpack.c.b16 %v2038, %v2034
    %v2223 = vpack.c.b16 %v2039, %v2035
    %v2224 = vpack.c.b16 %v2040, %v2036
    %v2225 = vpack.c.b16 %v2041, %v2037
    %v2226 = vpack.c.b16 %v2046, %v2042
    %v2227 = vpack.c.b16 %v2047, %v2043
    %v2228 = vpack.c.b16 %v2048, %v2044
    %v2229 = vpack.c.b16 %v2049, %v2045
    %v2230 = vpack.c.b16 %v2054, %v2050
    %v2231 = vpack.c.b16 %v2055, %v2051
    %v2232 = vpack.c.b16 %v2056, %v2052
    %v2233 = vpack.c.b16 %v2057, %v2053
    %v2234 = vpack.c.b16 %v2062, %v2058
    %v2235 = vpack.c.b16 %v2063, %v2059
    %v2236 = vpack.c.b16 %v2064, %v2060
    %v2237 = vpack.c.b16 %v2065, %v2061
    %v2238 = vpack.c.b16 %v2070, %v2066
    %v2239 = vpack.c.b16 %v2071, %v2067
    %v2240 = vpack.c.b16 %v2072, %v2068
    %v2241 = vpack.c.b16 %v2073, %v2069
    %v2242 = vpack.c.b16 %v2078, %v2074
    %v2243 = vpack.c.b16 %v2079, %v2075
    %v2244 = vpack.c.b16 %v2080, %v2076
    %v2245 = vpack.c.b16 %v2081, %v2077
    %v2246 = vpack.c.b16 %v2086, %v2082
    %v2247 = vpack.c.b16 %v2087, %v2083
    %v2248 = vpack.c.b16 %v2088, %v2084
    %v2249 = vpack.c.b16 %v2089, %v2085
    %v2250 = vpack.c.b16 %v2094, %v2090
    %v2251 = vpack.c.b16 %v2095, %v2091
    %v2252 = vpack.c.b16 %v2096, %v2092
    %v2253 = vpack.c.b16 %v2097, %v2093
    %v2254 = vpack.c.b16 %v2102, %v2098
    %v2255 = vpack.c.b16 %v2103, %v2099
    %v2256 = vpack.c.b16 %v2104, %v2100
    %v2257 = vpack.c.b16 %v2105, %v2101
    %v2258 = vpack.c.b16 %v2110, %v2106
    %v2259 = vpack.c.b16 %v2111, %v2107
    %v2260 = vpack.c.b16 %v2112, %v2108
    %v2261 = vpack.c.b16 %v2113, %v2109
    %v2262 = vpack.c.b16 %v2118, %v2114
    %v2263 = vpack.c.b16 %v2119, %v2115
    %v2264 = vpack.c.b16 %v2120, %v2116
    %v2265 = vpack.c.b16 %v2121, %v2117
    %v2266 = vpack.c.b16 %v2126, %v2122
    %v2267 = vpack.c.b16 %v2127, %v2123
    %v2268 = vpack.c.b16 %v2128, %v2124
    %v2269 = vpack.c.b16 %v2129, %v2125
    %v2270 = vpack.c.b16 %v2134, %v2130
    %v2271 = vpack.c.b16 %v2135, %v2131
    %v2272 = vpack.c.b16 %v2136, %v2132
    %v2273 = vpack.c.b16 %v2137, %v2133
    %v2274 = vpack.c.b16 %v2142, %v2138
    %v2275 = vpack.c.b16 %v2143, %v2139
    %v2276 = vpack.c.b16 %v2144, %v2140
    %v2277 = vpack.c.b16 %v2145, %v2141
    %v2278 = vpack.c.b16 %v2150, %v2146
    %v2279 = vpack.c.b16 %v2151, %v2147
    %v2280 = vpack.c.b16 %v2152, %v2148
    %v2281 = vpack.c.b16 %v2153, %v2149
    %2410 = vmatprep.subr.bf16.mxu0 %v2155
    %2411 = vmatpush1.bf16.msra.mxu0 %v2154
    %2412 = vmatprep.subr.bf16.mxu0 %v2159
    %2413 = vmatpush1.bf16.msra.mxu0 %v2158
    %2414 = vmatprep.subr.bf16.mxu0 %v2163
    %2415 = vmatpush1.bf16.msra.mxu0 %v2162
    %2416 = vmatprep.subr.bf16.mxu0 %v2167
    %2417 = vmatpush1.bf16.msra.mxu0 %v2166
    %2418 = vmatprep.subr.bf16.mxu0 %v2171
    %2419 = vmatpush1.bf16.msra.mxu0 %v2170
    %2420 = vmatprep.subr.bf16.mxu0 %v2175
    %2421 = vmatpush1.bf16.msra.mxu0 %v2174
    %2422 = vmatprep.subr.bf16.mxu0 %v2179
    %2423 = vmatpush1.bf16.msra.mxu0 %v2178
    %2424 = vmatprep.subr.bf16.mxu0 %v2183
    %2425 = vmatpush1.bf16.msra.mxu0 %v2182
    %2426 = vmatprep.subr.bf16.mxu0 %v2187
    %2427 = vmatpush1.bf16.msra.mxu0 %v2186
    %2428 = vmatprep.subr.bf16.mxu0 %v2191
    %2429 = vmatpush1.bf16.msra.mxu0 %v2190
    %2430 = vmatprep.subr.bf16.mxu0 %v2195
    %2431 = vmatpush1.bf16.msra.mxu0 %v2194
    %2432 = vmatprep.subr.bf16.mxu0 %v2199
    %2433 = vmatpush1.bf16.msra.mxu0 %v2198
    %2434 = vmatprep.subr.bf16.mxu0 %v2203
    %2435 = vmatpush1.bf16.msra.mxu0 %v2202
    %2436 = vmatprep.subr.bf16.mxu0 %v2207
    %2437 = vmatpush1.bf16.msra.mxu0 %v2206
    %2438 = vmatprep.subr.bf16.mxu0 %v2211
    %2439 = vmatpush1.bf16.msra.mxu0 %v2210
    %2440 = vmatprep.subr.bf16.mxu0 %v2215
    %2441 = vmatpush1.bf16.msra.mxu0 %v2214
    %2442 = vmatprep.mubr.bf16.mxu0 %v1617
    %2443 = vmatmul.mubr.bf16.gmra.mrb[0].mxu0 %v1616
    %v2444 = vpop.f32.mrb[0].mxu0
    %v2445 = vadd.f32 %v1753, %v2444
    %v2446 = vpop.f32.mrb[0].mxu0
    %v2447 = vadd.f32 %v1757, %v2446
    %v2448 = vpop.f32.mrb[0].mxu0
    %v2449 = vpop.f32.mrb[0].mxu0
    %2450 = vdwg.mxu0
    %2451 = vmatprep.subr.bf16.mxu0 %v2219
    %2452 = vmatpush1.bf16.msra.mxu0 %v2218
    %2453 = vmatprep.subr.bf16.mxu0 %v2223
    %2454 = vmatpush1.bf16.msra.mxu0 %v2222
    %2455 = vmatprep.subr.bf16.mxu0 %v2227
    %2456 = vmatpush1.bf16.msra.mxu0 %v2226
    %2457 = vmatprep.subr.bf16.mxu0 %v2231
    %2458 = vmatpush1.bf16.msra.mxu0 %v2230
    %2459 = vmatprep.subr.bf16.mxu0 %v2235
    %2460 = vmatpush1.bf16.msra.mxu0 %v2234
    %2461 = vmatprep.subr.bf16.mxu0 %v2239
    %2462 = vmatpush1.bf16.msra.mxu0 %v2238
    %2463 = vmatprep.subr.bf16.mxu0 %v2243
    %2464 = vmatpush1.bf16.msra.mxu0 %v2242
    %2465 = vmatprep.subr.bf16.mxu0 %v2247
    %2466 = vmatpush1.bf16.msra.mxu0 %v2246
    %2467 = vmatprep.subr.bf16.mxu0 %v2251
    %2468 = vmatpush1.bf16.msra.mxu0 %v2250
    %2469 = vmatprep.subr.bf16.mxu0 %v2255
    %2470 = vmatpush1.bf16.msra.mxu0 %v2254
    %2471 = vmatprep.subr.bf16.mxu0 %v2259
    %2472 = vmatpush1.bf16.msra.mxu0 %v2258
    %2473 = vmatprep.subr.bf16.mxu0 %v2263
    %2474 = vmatpush1.bf16.msra.mxu0 %v2262
    %2475 = vmatprep.subr.bf16.mxu0 %v2267
    %2476 = vmatpush1.bf16.msra.mxu0 %v2266
    %2477 = vmatprep.subr.bf16.mxu0 %v2271
    %2478 = vmatpush1.bf16.msra.mxu0 %v2270
    %2479 = vmatprep.subr.bf16.mxu0 %v2275
    %2480 = vmatpush1.bf16.msra.mxu0 %v2274
    %2481 = vmatprep.subr.bf16.mxu0 %v2279
    %2482 = vmatpush1.bf16.msra.mxu0 %v2278
    %2483 = vmatprep.mubr.bf16.mxu0 %v1619
    %2484 = vmatmul.mubr.bf16.gmra.mrb[0].mxu0 %v1618
    %v2485 = vpop.f32.mrb[0].mxu0
    %v2486 = vadd.f32 %v2445, %v2485
    %v2487 = vpop.f32.mrb[0].mxu0
    %v2488 = vadd.f32 %v2447, %v2487
    %v2489 = vpop.f32.mrb[0].mxu0
    %v2490 = vpop.f32.mrb[0].mxu0
    %2491 = vdwg.mxu0
    %2492 = vmatprep.subr.bf16.mxu0 %v2157
    %2493 = vmatpush1.bf16.msra.mxu0 %v2156
    %2494 = vmatprep.subr.bf16.mxu0 %v2161
    %2495 = vmatpush1.bf16.msra.mxu0 %v2160
    %2496 = vmatprep.subr.bf16.mxu0 %v2165
    %2497 = vmatpush1.bf16.msra.mxu0 %v2164
    %2498 = vmatprep.subr.bf16.mxu0 %v2169
    %2499 = vmatpush1.bf16.msra.mxu0 %v2168
    %2500 = vmatprep.subr.bf16.mxu0 %v2173
    %2501 = vmatpush1.bf16.msra.mxu0 %v2172
    %2502 = vmatprep.subr.bf16.mxu0 %v2177
    %2503 = vmatpush1.bf16.msra.mxu0 %v2176
    %2504 = vmatprep.subr.bf16.mxu0 %v2181
    %2505 = vmatpush1.bf16.msra.mxu0 %v2180
    %2506 = vmatprep.subr.bf16.mxu0 %v2185
    %2507 = vmatpush1.bf16.msra.mxu0 %v2184
    %2508 = vmatprep.subr.bf16.mxu0 %v2189
    %2509 = vmatpush1.bf16.msra.mxu0 %v2188
    %2510 = vmatprep.subr.bf16.mxu0 %v2193
    %2511 = vmatpush1.bf16.msra.mxu0 %v2192
    %2512 = vmatprep.subr.bf16.mxu0 %v2197
    %2513 = vmatpush1.bf16.msra.mxu0 %v2196
    %2514 = vmatprep.subr.bf16.mxu0 %v2201
    %2515 = vmatpush1.bf16.msra.mxu0 %v2200
    %2516 = vmatprep.subr.bf16.mxu0 %v2205
    %2517 = vmatpush1.bf16.msra.mxu0 %v2204
    %2518 = vmatprep.subr.bf16.mxu0 %v2209
    %2519 = vmatpush1.bf16.msra.mxu0 %v2208
    %2520 = vmatprep.subr.bf16.mxu0 %v2213
    %2521 = vmatpush1.bf16.msra.mxu0 %v2212
    %2522 = vmatprep.subr.bf16.mxu0 %v2217
    %2523 = vmatpush1.bf16.msra.mxu0 %v2216
    %2524 = vmatprep.mubr.bf16.mxu0 %v1617
    %2525 = vmatmul.mubr.bf16.gmra.mrb[0].mxu0 %v1616
    %v2526 = vpop.f32.mrb[0].mxu0
    %v2527 = vadd.f32 %v1761, %v2526
    %v2528 = vpop.f32.mrb[0].mxu0
    %v2529 = vadd.f32 %v1765, %v2528
    %v2530 = vpop.f32.mrb[0].mxu0
    %v2531 = vpop.f32.mrb[0].mxu0
    %2532 = vdwg.mxu0
    %2533 = vmatprep.subr.bf16.mxu0 %v2221
    %2534 = vmatpush1.bf16.msra.mxu0 %v2220
    %2535 = vmatprep.subr.bf16.mxu0 %v2225
    %2536 = vmatpush1.bf16.msra.mxu0 %v2224
    %2537 = vmatprep.subr.bf16.mxu0 %v2229
    %2538 = vmatpush1.bf16.msra.mxu0 %v2228
    %2539 = vmatprep.subr.bf16.mxu0 %v2233
    %2540 = vmatpush1.bf16.msra.mxu0 %v2232
    %2541 = vmatprep.subr.bf16.mxu0 %v2237
    %2542 = vmatpush1.bf16.msra.mxu0 %v2236
    %2543 = vmatprep.subr.bf16.mxu0 %v2241
    %2544 = vmatpush1.bf16.msra.mxu0 %v2240
    %2545 = vmatprep.subr.bf16.mxu0 %v2245
    %2546 = vmatpush1.bf16.msra.mxu0 %v2244
    %2547 = vmatprep.subr.bf16.mxu0 %v2249
    %2548 = vmatpush1.bf16.msra.mxu0 %v2248
    %2549 = vmatprep.subr.bf16.mxu0 %v2253
    %2550 = vmatpush1.bf16.msra.mxu0 %v2252
    %2551 = vmatprep.subr.bf16.mxu0 %v2257
    %2552 = vmatpush1.bf16.msra.mxu0 %v2256
    %2553 = vmatprep.subr.bf16.mxu0 %v2261
    %2554 = vmatpush1.bf16.msra.mxu0 %v2260
    %2555 = vmatprep.subr.bf16.mxu0 %v2265
    %2556 = vmatpush1.bf16.msra.mxu0 %v2264
    %2557 = vmatprep.subr.bf16.mxu0 %v2269
    %2558 = vmatpush1.bf16.msra.mxu0 %v2268
    %2559 = vmatprep.subr.bf16.mxu0 %v2273
    %2560 = vmatpush1.bf16.msra.mxu0 %v2272
    %2561 = vmatprep.subr.bf16.mxu0 %v2277
    %2562 = vmatpush1.bf16.msra.mxu0 %v2276
    %2563 = vmatprep.subr.bf16.mxu0 %v2281
    %2564 = vmatpush1.bf16.msra.mxu0 %v2280
    %2565 = vmatprep.mubr.bf16.mxu0 %v1619
    %2566 = vmatmul.mubr.bf16.gmra.mrb[0].mxu0 %v1618
    %v2567 = vpop.f32.mrb[0].mxu0
    %v2568 = vadd.f32 %v2527, %v2567
    %v2569 = vpop.f32.mrb[0].mxu0
    %v2570 = vadd.f32 %v2529, %v2569
    %v2571 = vpop.f32.mrb[0].mxu0
    %v2572 = vpop.f32.mrb[0].mxu0
    %2573 = vdwg.mxu0
    %v2574 = vmax.f32 %v2486, 0.0
    %v2575 = vmax.f32 %v2488, 0.0
    %v2576 = vmax.f32 %v2568, 0.0
    %v2577 = vmax.f32 %v2570, 0.0
    %v2578 = vpack.c.bf16 %v2574, %v2574
    %v2579 = vpack.c.bf16 %v2575, %v2575
    %v2580 = vpack.c.bf16 %v2576, %v2576
    %v2581 = vpack.c.bf16 %v2577, %v2577
    %v2582 = vld [vmem:[#allocation6] sm:$0xf]
    %v2583 = vld [vmem:[#allocation6 + $0x4] sm:$0xf]
    %v2584 = vld [vmem:[#allocation6 + $0x8] sm:$0xf]
    %v2585 = vld [vmem:[#allocation6 + $0xc] sm:$0xf]
    %v2586 = vld [vmem:[#allocation6 + $0x10] sm:$0xf]
    %v2587 = vld [vmem:[#allocation6 + $0x14] sm:$0xf]
    %v2588 = vld [vmem:[#allocation6 + $0x18] sm:$0xf]
    %v2589 = vld [vmem:[#allocation6 + $0x1c] sm:$0xf]
    %v2590 = vld [vmem:[#allocation6 + $0x20] sm:$0xf]
    %v2591 = vld [vmem:[#allocation6 + $0x24] sm:$0xf]
    %v2592 = vld [vmem:[#allocation6 + $0x28] sm:$0xf]
    %v2593 = vld [vmem:[#allocation6 + $0x2c] sm:$0xf]
    %v2594 = vld [vmem:[#allocation6 + $0x30] sm:$0xf]
    %v2595 = vld [vmem:[#allocation6 + $0x34] sm:$0xf]
    %v2596 = vld [vmem:[#allocation6 + $0x38] sm:$0xf]
    %v2597 = vld [vmem:[#allocation6 + $0x3c] sm:$0xf]
    %v2598 = vld [vmem:[#allocation6 + $0x40] sm:$0xf]
    %v2599 = vld [vmem:[#allocation6 + $0x44] sm:$0xf]
    %v2600 = vld [vmem:[#allocation6 + $0x48] sm:$0xf]
    %v2601 = vld [vmem:[#allocation6 + $0x4c] sm:$0xf]
    %v2602 = vld [vmem:[#allocation6 + $0x50] sm:$0xf]
    %v2603 = vld [vmem:[#allocation6 + $0x54] sm:$0xf]
    %v2604 = vld [vmem:[#allocation6 + $0x58] sm:$0xf]
    %v2605 = vld [vmem:[#allocation6 + $0x5c] sm:$0xf]
    %v2606 = vld [vmem:[#allocation6 + $0x60] sm:$0xf]
    %v2607 = vld [vmem:[#allocation6 + $0x64] sm:$0xf]
    %v2608 = vld [vmem:[#allocation6 + $0x68] sm:$0xf]
    %v2609 = vld [vmem:[#allocation6 + $0x6c] sm:$0xf]
    %v2610 = vld [vmem:[#allocation6 + $0x70] sm:$0xf]
    %v2611 = vld [vmem:[#allocation6 + $0x74] sm:$0xf]
    %v2612 = vld [vmem:[#allocation6 + $0x78] sm:$0xf]
    %v2613 = vld [vmem:[#allocation6 + $0x7c] sm:$0xf]
    %v2614 = vld [vmem:[#allocation6 + $0x80] sm:$0xf]
    %v2615 = vld [vmem:[#allocation6 + $0x84] sm:$0xf]
    %v2616 = vld [vmem:[#allocation6 + $0x88] sm:$0xf]
    %v2617 = vld [vmem:[#allocation6 + $0x8c] sm:$0xf]
    %v2618 = vld [vmem:[#allocation6 + $0x90] sm:$0xf]
    %v2619 = vld [vmem:[#allocation6 + $0x94] sm:$0xf]
    %v2620 = vld [vmem:[#allocation6 + $0x98] sm:$0xf]
    %v2621 = vld [vmem:[#allocation6 + $0x9c] sm:$0xf]
    %v2622 = vld [vmem:[#allocation6 + $0xa0] sm:$0xf]
    %v2623 = vld [vmem:[#allocation6 + $0xa4] sm:$0xf]
    %v2624 = vld [vmem:[#allocation6 + $0xa8] sm:$0xf]
    %v2625 = vld [vmem:[#allocation6 + $0xac] sm:$0xf]
    %v2626 = vld [vmem:[#allocation6 + $0xb0] sm:$0xf]
    %v2627 = vld [vmem:[#allocation6 + $0xb4] sm:$0xf]
    %v2628 = vld [vmem:[#allocation6 + $0xb8] sm:$0xf]
    %v2629 = vld [vmem:[#allocation6 + $0xbc] sm:$0xf]
    %v2630 = vld [vmem:[#allocation6 + $0xc0] sm:$0xf]
    %v2631 = vld [vmem:[#allocation6 + $0xc4] sm:$0xf]
    %v2632 = vld [vmem:[#allocation6 + $0xc8] sm:$0xf]
    %v2633 = vld [vmem:[#allocation6 + $0xcc] sm:$0xf]
    %v2634 = vld [vmem:[#allocation6 + $0xd0] sm:$0xf]
    %v2635 = vld [vmem:[#allocation6 + $0xd4] sm:$0xf]
    %v2636 = vld [vmem:[#allocation6 + $0xd8] sm:$0xf]
    %v2637 = vld [vmem:[#allocation6 + $0xdc] sm:$0xf]
    %v2638 = vld [vmem:[#allocation6 + $0xe0] sm:$0xf]
    %v2639 = vld [vmem:[#allocation6 + $0xe4] sm:$0xf]
    %v2640 = vld [vmem:[#allocation6 + $0xe8] sm:$0xf]
    %v2641 = vld [vmem:[#allocation6 + $0xec] sm:$0xf]
    %v2642 = vld [vmem:[#allocation6 + $0xf0] sm:$0xf]
    %v2643 = vld [vmem:[#allocation6 + $0xf4] sm:$0xf]
    %v2644 = vld [vmem:[#allocation6 + $0xf8] sm:$0xf]
    %v2645 = vld [vmem:[#allocation6 + $0xfc] sm:$0xf]
    %v2646 = vld [vmem:[%s6] sm:$0x1]
    %v2648 = vlaneseq
    %v2649 = vshrl.u32 %v2648, 7
    %v2650 = vsub.s32 0, %v2649
    %v2651 = vrot.slane %v2646, %v2650
    %v2717 = vunpack.c.l.b16 %v2582
    %v2718 = vunpack.c.l.b16 %v2583
    %v2719 = vunpack.c.l.b16 %v2584
    %v2720 = vunpack.c.l.b16 %v2585
    %v2721 = vunpack.c.l.b16 %v2586
    %v2722 = vunpack.c.l.b16 %v2587
    %v2723 = vunpack.c.l.b16 %v2588
    %v2724 = vunpack.c.l.b16 %v2589
    %v2725 = vunpack.c.l.b16 %v2590
    %v2726 = vunpack.c.l.b16 %v2591
    %v2727 = vunpack.c.l.b16 %v2592
    %v2728 = vunpack.c.l.b16 %v2593
    %v2729 = vunpack.c.l.b16 %v2594
    %v2730 = vunpack.c.l.b16 %v2595
    %v2731 = vunpack.c.l.b16 %v2596
    %v2732 = vunpack.c.l.b16 %v2597
    %v2733 = vunpack.c.l.b16 %v2598
    %v2734 = vunpack.c.l.b16 %v2599
    %v2735 = vunpack.c.l.b16 %v2600
    %v2736 = vunpack.c.l.b16 %v2601
    %v2737 = vunpack.c.l.b16 %v2602
    %v2738 = vunpack.c.l.b16 %v2603
    %v2739 = vunpack.c.l.b16 %v2604
    %v2740 = vunpack.c.l.b16 %v2605
    %v2741 = vunpack.c.l.b16 %v2606
    %v2742 = vunpack.c.l.b16 %v2607
    %v2743 = vunpack.c.l.b16 %v2608
    %v2744 = vunpack.c.l.b16 %v2609
    %v2745 = vunpack.c.l.b16 %v2610
    %v2746 = vunpack.c.l.b16 %v2611
    %v2747 = vunpack.c.l.b16 %v2612
    %v2748 = vunpack.c.l.b16 %v2613
    %v2749 = vunpack.c.l.b16 %v2614
    %v2750 = vunpack.c.l.b16 %v2615
    %v2751 = vunpack.c.l.b16 %v2616
    %v2752 = vunpack.c.l.b16 %v2617
    %v2753 = vunpack.c.l.b16 %v2618
    %v2754 = vunpack.c.l.b16 %v2619
    %v2755 = vunpack.c.l.b16 %v2620
    %v2756 = vunpack.c.l.b16 %v2621
    %v2757 = vunpack.c.l.b16 %v2622
    %v2758 = vunpack.c.l.b16 %v2623
    %v2759 = vunpack.c.l.b16 %v2624
    %v2760 = vunpack.c.l.b16 %v2625
    %v2761 = vunpack.c.l.b16 %v2626
    %v2762 = vunpack.c.l.b16 %v2627
    %v2763 = vunpack.c.l.b16 %v2628
    %v2764 = vunpack.c.l.b16 %v2629
    %v2765 = vunpack.c.l.b16 %v2630
    %v2766 = vunpack.c.l.b16 %v2631
    %v2767 = vunpack.c.l.b16 %v2632
    %v2768 = vunpack.c.l.b16 %v2633
    %v2769 = vunpack.c.l.b16 %v2634
    %v2770 = vunpack.c.l.b16 %v2635
    %v2771 = vunpack.c.l.b16 %v2636
    %v2772 = vunpack.c.l.b16 %v2637
    %v2773 = vunpack.c.l.b16 %v2638
    %v2774 = vunpack.c.l.b16 %v2639
    %v2775 = vunpack.c.l.b16 %v2640
    %v2776 = vunpack.c.l.b16 %v2641
    %v2777 = vunpack.c.l.b16 %v2642
    %v2778 = vunpack.c.l.b16 %v2643
    %v2779 = vunpack.c.l.b16 %v2644
    %v2780 = vunpack.c.l.b16 %v2645
    %v2781 = vpack.c.b16 %v2718, %v2717
    %v2782 = vpack.c.b16 %v2720, %v2719
    %v2783 = vpack.c.b16 %v2722, %v2721
    %v2784 = vpack.c.b16 %v2724, %v2723
    %v2785 = vpack.c.b16 %v2726, %v2725
    %v2786 = vpack.c.b16 %v2728, %v2727
    %v2787 = vpack.c.b16 %v2730, %v2729
    %v2788 = vpack.c.b16 %v2732, %v2731
    %v2789 = vpack.c.b16 %v2734, %v2733
    %v2790 = vpack.c.b16 %v2736, %v2735
    %v2791 = vpack.c.b16 %v2738, %v2737
    %v2792 = vpack.c.b16 %v2740, %v2739
    %v2793 = vpack.c.b16 %v2742, %v2741
    %v2794 = vpack.c.b16 %v2744, %v2743
    %v2795 = vpack.c.b16 %v2746, %v2745
    %v2796 = vpack.c.b16 %v2748, %v2747
    %v2797 = vpack.c.b16 %v2750, %v2749
    %v2798 = vpack.c.b16 %v2752, %v2751
    %v2799 = vpack.c.b16 %v2754, %v2753
    %v2800 = vpack.c.b16 %v2756, %v2755
    %v2801 = vpack.c.b16 %v2758, %v2757
    %v2802 = vpack.c.b16 %v2760, %v2759
    %v2803 = vpack.c.b16 %v2762, %v2761
    %v2804 = vpack.c.b16 %v2764, %v2763
    %v2805 = vpack.c.b16 %v2766, %v2765
    %v2806 = vpack.c.b16 %v2768, %v2767
    %v2807 = vpack.c.b16 %v2770, %v2769
    %v2808 = vpack.c.b16 %v2772, %v2771
    %v2809 = vpack.c.b16 %v2774, %v2773
    %v2810 = vpack.c.b16 %v2776, %v2775
    %v2811 = vpack.c.b16 %v2778, %v2777
    %v2812 = vpack.c.b16 %v2780, %v2779
    %2845 = vmatprep.subr.bf16.mxu0 0
    %2846 = vmatpush1.bf16.msra.mxu0 %v2781
    %2847 = vmatprep.subr.bf16.mxu0 0
    %2848 = vmatpush1.bf16.msra.mxu0 %v2782
    %2849 = vmatprep.subr.bf16.mxu0 0
    %2850 = vmatpush1.bf16.msra.mxu0 %v2783
    %2851 = vmatprep.subr.bf16.mxu0 0
    %2852 = vmatpush1.bf16.msra.mxu0 %v2784
    %2853 = vmatprep.subr.bf16.mxu0 0
    %2854 = vmatpush1.bf16.msra.mxu0 %v2785
    %2855 = vmatprep.subr.bf16.mxu0 0
    %2856 = vmatpush1.bf16.msra.mxu0 %v2786
    %2857 = vmatprep.subr.bf16.mxu0 0
    %2858 = vmatpush1.bf16.msra.mxu0 %v2787
    %2859 = vmatprep.subr.bf16.mxu0 0
    %2860 = vmatpush1.bf16.msra.mxu0 %v2788
    %2861 = vmatprep.subr.bf16.mxu0 0
    %2862 = vmatpush1.bf16.msra.mxu0 %v2789
    %2863 = vmatprep.subr.bf16.mxu0 0
    %2864 = vmatpush1.bf16.msra.mxu0 %v2790
    %2865 = vmatprep.subr.bf16.mxu0 0
    %2866 = vmatpush1.bf16.msra.mxu0 %v2791
    %2867 = vmatprep.subr.bf16.mxu0 0
    %2868 = vmatpush1.bf16.msra.mxu0 %v2792
    %2869 = vmatprep.subr.bf16.mxu0 0
    %2870 = vmatpush1.bf16.msra.mxu0 %v2793
    %2871 = vmatprep.subr.bf16.mxu0 0
    %2872 = vmatpush1.bf16.msra.mxu0 %v2794
    %2873 = vmatprep.subr.bf16.mxu0 0
    %2874 = vmatpush1.bf16.msra.mxu0 %v2795
    %2875 = vmatprep.subr.bf16.mxu0 0
    %2876 = vmatpush1.bf16.msra.mxu0 %v2796
    %2877 = vmatprep.mubr.bf16.mxu0 %v2579
    %2878 = vmatmul.mubr.bf16.gmra.mrb[0].mxu0 %v2578
    %v2879 = vpop.f32.mrb[0].mxu0
    %v2880 = vadd.f32 %v2651, %v2879
    %v2881 = vpop.f32.mrb[0].mxu0
    %v2882 = vpop.f32.mrb[0].mxu0
    %v2883 = vpop.f32.mrb[0].mxu0
    %2884 = vdwg.mxu0
    %2885 = vmatprep.subr.bf16.mxu0 0
    %2886 = vmatpush1.bf16.msra.mxu0 %v2797
    %2887 = vmatprep.subr.bf16.mxu0 0
    %2888 = vmatpush1.bf16.msra.mxu0 %v2798
    %2889 = vmatprep.subr.bf16.mxu0 0
    %2890 = vmatpush1.bf16.msra.mxu0 %v2799
    %2891 = vmatprep.subr.bf16.mxu0 0
    %2892 = vmatpush1.bf16.msra.mxu0 %v2800
    %2893 = vmatprep.subr.bf16.mxu0 0
    %2894 = vmatpush1.bf16.msra.mxu0 %v2801
    %2895 = vmatprep.subr.bf16.mxu0 0
    %2896 = vmatpush1.bf16.msra.mxu0 %v2802
    %2897 = vmatprep.subr.bf16.mxu0 0
    %2898 = vmatpush1.bf16.msra.mxu0 %v2803
    %2899 = vmatprep.subr.bf16.mxu0 0
    %2900 = vmatpush1.bf16.msra.mxu0 %v2804
    %2901 = vmatprep.subr.bf16.mxu0 0
    %2902 = vmatpush1.bf16.msra.mxu0 %v2805
    %2903 = vmatprep.subr.bf16.mxu0 0
    %2904 = vmatpush1.bf16.msra.mxu0 %v2806
    %2905 = vmatprep.subr.bf16.mxu0 0
    %2906 = vmatpush1.bf16.msra.mxu0 %v2807
    %2907 = vmatprep.subr.bf16.mxu0 0
    %2908 = vmatpush1.bf16.msra.mxu0 %v2808
    %2909 = vmatprep.subr.bf16.mxu0 0
    %2910 = vmatpush1.bf16.msra.mxu0 %v2809
    %2911 = vmatprep.subr.bf16.mxu0 0
    %2912 = vmatpush1.bf16.msra.mxu0 %v2810
    %2913 = vmatprep.subr.bf16.mxu0 0
    %2914 = vmatpush1.bf16.msra.mxu0 %v2811
    %2915 = vmatprep.subr.bf16.mxu0 0
    %2916 = vmatpush1.bf16.msra.mxu0 %v2812
    %2917 = vmatprep.mubr.bf16.mxu0 %v2581
    %2918 = vmatmul.mubr.bf16.gmra.mrb[0].mxu0 %v2580
    %v2919 = vpop.f32.mrb[0].mxu0
    %v2920 = vadd.f32 %v2880, %v2919
    %v2921 = vpop.f32.mrb[0].mxu0
    %v2922 = vpop.f32.mrb[0].mxu0
    %v2923 = vpop.f32.mrb[0].mxu0
    %2924 = vdwg.mxu0
    %2925 = vst [vmem:[%s7] sm:$0xff] %v2920
    // Predicated region
    $region42: #{neural_network_forward.1} parent=1 // pred_check
      _
    $region43: #{neural_network_forward.1} parent=1 // pred_check_branch
      %2927 = sbr.rel (0) target = $region45
    $region44: #{neural_network_forward.1} parent=1 // pred_region
      _
    $region45: #{neural_network_forward.1} parent=1 // pred_fallthru
      _
    // Predicated region
    $region46: #{neural_network_forward.1} parent=1 // pred_check
      _
    $region47: #{neural_network_forward.1} parent=1 // pred_check_branch
      %2929 = sbr.rel (0) target = $region49
    $region48: #{neural_network_forward.1} parent=1 // pred_region
      _
    $region49: #{neural_network_forward.1} parent=1 // pred_fallthru
      _
    %2930 = vsyncpa [#allocation3], 1
    %2931 = vsyncpa [#allocation5], 1

</llo_original>
